<compile_context>
chip_gen: v6e
topology: v6e:2x2x1
jax: 0.10.0
libtpu: 0.0.40
codegen_flags: <defaults>
</compile_context>

<pallas_src>
import functools

import jax
import jax.numpy as jnp
from jax.experimental import pallas as pl
from jax.experimental.pallas import tpu as pltpu


# ----------------------------------------------------------------------------
# Fused kernel: 2-layer LSTM recurrence (layer-by-layer) + final Linear.
# Input / output sequences are time-major flattened: row (t, b) -> t*B + b.
# ----------------------------------------------------------------------------
def _fused_lstm_linear_kernel(T, B, H, E,
                              x_ref,                       # (T*B, E)
                              wih0_ref, whh0_ref, b0_ref,  # (E,4H) (H,4H) (1,4H)
                              wih1_ref, whh1_ref, b1_ref,  # (H,4H) (H,4H) (1,4H)
                              lin_w_ref, lin_b_ref,        # (H,W)  (1,W)
                              h0_ref, c0_ref,              # (2,B,H) initial states
                              pre_ref, hn_ref, cn_ref,     # (T*B,W) (2,B,H) (2,B,H)
                              gx0_sc, gx1_sc,              # (T*B,4H) scratches
                              h0_buf, h1_buf):             # (T*B,H)  scratches
    def cell(h_prev, c_prev, whh, gx_t):
        # PyTorch LSTM gate order: i, f, g, o.  Bias already folded into gx_t.
        gates = jnp.dot(h_prev, whh, preferred_element_type=jnp.float32) + gx_t
        sig = jax.nn.sigmoid(gates)          # one EUP push over the whole vreg
        i = sig[:, 0 * H:1 * H]
        f = sig[:, 1 * H:2 * H]
        o = sig[:, 3 * H:4 * H]
        g = jnp.tanh(gates[:, 2 * H:3 * H])
        c_new = f * c_prev + i * g
        h_new = o * jnp.tanh(c_new)
        return h_new, c_new

    # ---- layer 0: batched input projection (off the serial path) ----
    gx0_sc[...] = (jnp.dot(x_ref[...], wih0_ref[...],
                           preferred_element_type=jnp.float32) + b0_ref[...])

    whh0 = whh0_ref[...]
    h0 = h0_ref[0, :, :]
    c0 = c0_ref[0, :, :]
    for t in range(T):                       # serial recurrence, fully unrolled
        h0, c0 = cell(h0, c0, whh0, gx0_sc[t * B:(t + 1) * B, :])
        h0_buf[t * B:(t + 1) * B, :] = h0

    # ---- layer 1: batched input projection on all h0_t at once ----
    gx1_sc[...] = (jnp.dot(h0_buf[...], wih1_ref[...],
                           preferred_element_type=jnp.float32) + b1_ref[...])

    whh1 = whh1_ref[...]
    h1 = h0_ref[1, :, :]
    c1 = c0_ref[1, :, :]
    for t in range(T):
        h1, c1 = cell(h1, c1, whh1, gx1_sc[t * B:(t + 1) * B, :])
        h1_buf[t * B:(t + 1) * B, :] = h1

    # ---- Dropout(0.3) == identity (eval); fused Linear on all timesteps ----
    pre_ref[...] = (jnp.dot(h1_buf[...], lin_w_ref[...],
                            preferred_element_type=jnp.float32) + lin_b_ref[...])

    # ---- final states ----
    hn_ref[0, :, :] = h0
    hn_ref[1, :, :] = h1
    cn_ref[0, :, :] = c0
    cn_ref[1, :, :] = c1


def fused_lstm_linear(x_tb, wih0_t, whh0_t, b0, wih1_t, whh1_t, b1,
                      lin_w_t, lin_b, h0, c0, *, B, T, H):
    E = x_tb.shape[1]
    W = lin_w_t.shape[1]
    kernel = functools.partial(_fused_lstm_linear_kernel, T, B, H, E)

    vmem = lambda: pl.BlockSpec(memory_space=pltpu.MemorySpace.VMEM)
    out_shapes = (
        jax.ShapeDtypeStruct((T * B, W), jnp.float32),   # per-timestep linear (time-major)
        jax.ShapeDtypeStruct((2, B, H), jnp.float32),    # h_n
        jax.ShapeDtypeStruct((2, B, H), jnp.float32),    # c_n
    )
    return pl.pallas_call(
        kernel,
        out_shape=out_shapes,
        in_specs=[vmem() for _ in range(11)],
        out_specs=(vmem(), vmem(), vmem()),
        scratch_shapes=[
            pltpu.VMEM((T * B, 4 * H), jnp.float32),     # gx0: layer-0 input proj
            pltpu.VMEM((T * B, 4 * H), jnp.float32),     # gx1: layer-1 input proj
            pltpu.VMEM((T * B, H), jnp.float32),         # all h0_t
            pltpu.VMEM((T * B, H), jnp.float32),         # all h1_t
        ],
    )(x_tb, wih0_t, whh0_t, b0, wih1_t, whh1_t, b1, lin_w_t, lin_b, h0, c0)


# ----------------------------------------------------------------------------
# Parameter init (PyTorch layout) + one-time fusion/prep (done once, not per call)
# ----------------------------------------------------------------------------
def init_params(key, embeddingNum, hiddenNum, wordSize):
    H = hiddenNum
    k = 1.0 / jnp.sqrt(jnp.float32(H))
    keys = jax.random.split(key, 10)
    u = lambda kk, shape: jax.random.uniform(kk, shape, jnp.float32, -k, k)
    return {
        "wih0": u(keys[0], (4 * H, embeddingNum)),
        "whh0": u(keys[1], (4 * H, H)),
        "bih0": u(keys[2], (4 * H,)),
        "bhh0": u(keys[3], (4 * H,)),
        "wih1": u(keys[4], (4 * H, H)),
        "whh1": u(keys[5], (4 * H, H)),
        "bih1": u(keys[6], (4 * H,)),
        "bhh1": u(keys[7], (4 * H,)),
        "lin_w": u(keys[8], (wordSize, H)),
        "lin_b": u(keys[9], (wordSize,)),
    }


def prepare_params(params):
    """One-time weight fusion: transposed weights + summed biases for the kernel."""
    return {
        "wih0_t": params["wih0"].T,                                    # (E, 4H)
        "whh0_t": params["whh0"].T,                                    # (H, 4H)
        "b0": (params["bih0"] + params["bhh0"]).reshape(1, -1),        # (1, 4H)
        "wih1_t": params["wih1"].T,                                    # (H, 4H)
        "whh1_t": params["whh1"].T,                                    # (H, 4H)
        "b1": (params["bih1"] + params["bhh1"]).reshape(1, -1),        # (1, 4H)
        "lin_w_t": params["lin_w"].T,                                  # (H, W)
        "lin_b": params["lin_b"].reshape(1, -1),                       # (1, W)
    }


# ----------------------------------------------------------------------------
# Model wrapper
# ----------------------------------------------------------------------------
def my_model_forward(prepared, xsEmbedding, hiddenNum, h_0=None, c_0=None):
    B, T, E = xsEmbedding.shape
    H = hiddenNum
    if h_0 is None or c_0 is None:
        h_0 = jnp.zeros((2, B, H), jnp.float32)
        c_0 = jnp.zeros((2, B, H), jnp.float32)

    # Time-major flatten so the kernel can hoist the input projection and slice
    # each timestep's rows contiguously: row (t, b) -> t*B + b.
    x_tb = jnp.swapaxes(xsEmbedding, 0, 1).reshape(T * B, E)

    pre_tb, h_n, c_n = fused_lstm_linear(
        x_tb,
        prepared["wih0_t"], prepared["whh0_t"], prepared["b0"],
        prepared["wih1_t"], prepared["whh1_t"], prepared["b1"],
        prepared["lin_w_t"], prepared["lin_b"],
        h_0, c_0, B=B, T=T, H=H)

    # Flatten(0, 1) with batch-first semantics: reorder (T,B,W) -> (B*T, W).
    pre = jnp.swapaxes(pre_tb.reshape(T, B, -1), 0, 1).reshape(B * T, -1)
    return pre, (h_n, c_n)


# ----------------------------------------------------------------------------
# Pure-JAX reference (for correctness check only)
# ----------------------------------------------------------------------------
def _reference_forward(params, x, hiddenNum):
    B, T, E = x.shape
    H = hiddenNum

    def run_layer(inp, wih, whh, bih, bhh):
        h = jnp.zeros((B, H), jnp.float32)
        c = jnp.zeros((B, H), jnp.float32)
        outs = []
        for t in range(T):
            gates = inp[:, t, :] @ wih.T + h @ whh.T + bih + bhh
            i = jax.nn.sigmoid(gates[:, 0 * H:1 * H])
            f = jax.nn.sigmoid(gates[:, 1 * H:2 * H])
            g = jnp.tanh(gates[:, 2 * H:3 * H])
            o = jax.nn.sigmoid(gates[:, 3 * H:4 * H])
            c = f * c + i * g
            h = o * jnp.tanh(c)
            outs.append(h)
        return jnp.stack(outs, axis=1), h, c

    out0, h0f, c0f = run_layer(x, params["wih0"], params["whh0"],
                               params["bih0"], params["bhh0"])
    out1, h1f, c1f = run_layer(out0, params["wih1"], params["whh1"],
                               params["bih1"], params["bhh1"])
    flat = out1.reshape(B * T, H)
    pre = flat @ params["lin_w"].T + params["lin_b"]
    h_n = jnp.stack([h0f, h1f], axis=0)
    c_n = jnp.stack([c0f, c1f], axis=0)
    return pre, (h_n, c_n)


if __name__ == "__main__":
    embeddingNum = 32
    hiddenNum = 32
    wordSize = 64
    B, T = 2, 8

    key = jax.random.PRNGKey(0)
    pkey, xkey = jax.random.split(key)
    params = init_params(pkey, embeddingNum, hiddenNum, wordSize)
    prepared = prepare_params(params)           # one-time weight fusion
    xsEmbedding = jax.random.normal(xkey, (B, T, embeddingNum), jnp.float32)

    pre, (h_n, c_n) = my_model_forward(prepared, xsEmbedding, hiddenNum)
    jax.block_until_ready((pre, h_n, c_n))

    assert pre.shape == (B * T, wordSize), pre.shape
    assert h_n.shape == (2, B, hiddenNum), h_n.shape
    assert c_n.shape == (2, B, hiddenNum), c_n.shape

    # Numerical check against a pure-JAX reference (loose tol: MXU f32 matmul).
    pre_r, (h_r, c_r) = _reference_forward(params, xsEmbedding, hiddenNum)
    err = max(float(jnp.max(jnp.abs(pre - pre_r))),
              float(jnp.max(jnp.abs(h_n - h_r))),
              float(jnp.max(jnp.abs(c_n - c_r))))
    assert err < 5e-2, f"max abs error {err}"

    print("KERNEL_OK")
</pallas_src>

<mosaic_0001>
module attributes {stable_mosaic.version = 11 : i64} {
  func.func @_fused_lstm_linear_kernel(%arg0: memref<16x32xf32, #tpu.memory_space<vmem>>, %arg1: memref<32x128xf32, #tpu.memory_space<vmem>>, %arg2: memref<32x128xf32, #tpu.memory_space<vmem>>, %arg3: memref<1x128xf32, #tpu.memory_space<vmem>>, %arg4: memref<32x128xf32, #tpu.memory_space<vmem>>, %arg5: memref<32x128xf32, #tpu.memory_space<vmem>>, %arg6: memref<1x128xf32, #tpu.memory_space<vmem>>, %arg7: memref<32x64xf32, #tpu.memory_space<vmem>>, %arg8: memref<1x64xf32, #tpu.memory_space<vmem>>, %arg9: memref<2x2x32xf32, #tpu.memory_space<vmem>>, %arg10: memref<2x2x32xf32, #tpu.memory_space<vmem>>, %arg11: memref<16x64xf32, #tpu.memory_space<vmem>>, %arg12: memref<2x2x32xf32, #tpu.memory_space<vmem>>, %arg13: memref<2x2x32xf32, #tpu.memory_space<vmem>>, %arg14: memref<16x128xf32, #tpu.memory_space<vmem>>, %arg15: memref<16x128xf32, #tpu.memory_space<vmem>>, %arg16: memref<16x32xf32, #tpu.memory_space<vmem>>, %arg17: memref<16x32xf32, #tpu.memory_space<vmem>>) attributes {dimension_semantics = [], scalar_prefetch = 0 : i64, scratch_operands = 4 : i64, tpu.core_type = #tpu.core_type<tc>} {
    %c0 = arith.constant 0 : index
    %c0_0 = arith.constant 0 : index
    %0 = vector.load %arg0[%c0, %c0_0] : memref<16x32xf32, #tpu.memory_space<vmem>>, vector<16x32xf32>
    %c0_1 = arith.constant 0 : index
    %c0_2 = arith.constant 0 : index
    %1 = vector.load %arg1[%c0_1, %c0_2] : memref<32x128xf32, #tpu.memory_space<vmem>>, vector<32x128xf32>
    %cst = arith.constant dense<0.000000e+00> : vector<16x128xf32>
    %2 = tpu.matmul %0, %1, %cst {dimension_numbers = #tpu.dot_dimension_numbers<[1], [0], [0], [1], [0, 0, 1, 1], [], []>} : vector<16x32xf32>, vector<32x128xf32>, vector<16x128xf32> -> vector<16x128xf32>
    %c0_3 = arith.constant 0 : index
    %c0_4 = arith.constant 0 : index
    %3 = vector.load %arg3[%c0_3, %c0_4] : memref<1x128xf32, #tpu.memory_space<vmem>>, vector<1x128xf32>
    %4 = vector.broadcast %3 : vector<1x128xf32> to vector<16x128xf32>
    %5 = arith.addf %2, %4 : vector<16x128xf32>
    %c0_5 = arith.constant 0 : index
    %c0_6 = arith.constant 0 : index
    %6 = vector.load %arg14[%c0_5, %c0_6] : memref<16x128xf32, #tpu.memory_space<vmem>>, vector<16x128xf32>
    tpu.vector_store %arg14[%c0_5, %c0_6], %5 {strides = array<i32>} : memref<16x128xf32, #tpu.memory_space<vmem>>, vector<16x128xf32>,
    %c0_7 = arith.constant 0 : index
    %c0_8 = arith.constant 0 : index
    %7 = vector.load %arg2[%c0_7, %c0_8] : memref<32x128xf32, #tpu.memory_space<vmem>>, vector<32x128xf32>
    %c0_9 = arith.constant 0 : index
    %c0_10 = arith.constant 0 : index
    %c0_11 = arith.constant 0 : index
    %8 = vector.load %arg9[%c0_9, %c0_10, %c0_11] : memref<2x2x32xf32, #tpu.memory_space<vmem>>, vector<1x2x32xf32>
    %9 = vector.shape_cast %8 : vector<1x2x32xf32> to vector<2x32xf32>
    %c0_12 = arith.constant 0 : index
    %c0_13 = arith.constant 0 : index
    %c0_14 = arith.constant 0 : index
    %10 = vector.load %arg10[%c0_12, %c0_13, %c0_14] : memref<2x2x32xf32, #tpu.memory_space<vmem>>, vector<1x2x32xf32>
    %11 = vector.shape_cast %10 : vector<1x2x32xf32> to vector<2x32xf32>
    %c0_15 = arith.constant 0 : index
    %c0_16 = arith.constant 0 : index
    %12 = vector.load %arg14[%c0_15, %c0_16] : memref<16x128xf32, #tpu.memory_space<vmem>>, vector<2x128xf32>
    %cst_17 = arith.constant dense<0.000000e+00> : vector<2x128xf32>
    %13 = tpu.matmul %9, %7, %cst_17 {dimension_numbers = #tpu.dot_dimension_numbers<[1], [0], [0], [1], [0, 0, 1, 1], [], []>} : vector<2x32xf32>, vector<32x128xf32>, vector<2x128xf32> -> vector<2x128xf32>
    %14 = arith.addf %13, %12 : vector<2x128xf32>
    %15 = arith.negf %14 : vector<2x128xf32>
    %16 = math.exp %15 : vector<2x128xf32>
    %cst_18 = arith.constant 1.000000e+00 : f32
    %17 = vector.broadcast %cst_18 : f32 to vector<2x128xf32>
    %18 = arith.addf %17, %16 : vector<2x128xf32>
    %19 = arith.divf %17, %18 : vector<2x128xf32>
    %20 = vector.extract_strided_slice %19 {offsets = [0, 0], sizes = [2, 32], strides = [1, 1]} : vector<2x128xf32> to vector<2x32xf32>
    %21 = vector.extract_strided_slice %19 {offsets = [0, 32], sizes = [2, 32], strides = [1, 1]} : vector<2x128xf32> to vector<2x32xf32>
    %22 = vector.extract_strided_slice %19 {offsets = [0, 96], sizes = [2, 32], strides = [1, 1]} : vector<2x128xf32> to vector<2x32xf32>
    %23 = vector.extract_strided_slice %14 {offsets = [0, 64], sizes = [2, 32], strides = [1, 1]} : vector<2x128xf32> to vector<2x32xf32>
    %24 = math.tanh %23 : vector<2x32xf32>
    %25 = arith.mulf %21, %11 : vector<2x32xf32>
    %26 = arith.mulf %20, %24 : vector<2x32xf32>
    %27 = arith.addf %25, %26 : vector<2x32xf32>
    %28 = math.tanh %27 : vector<2x32xf32>
    %29 = arith.mulf %22, %28 : vector<2x32xf32>
    %c0_19 = arith.constant 0 : index
    %c0_20 = arith.constant 0 : index
    %30 = vector.load %arg16[%c0_19, %c0_20] : memref<16x32xf32, #tpu.memory_space<vmem>>, vector<2x32xf32>
    tpu.vector_store %arg16[%c0_19, %c0_20], %29 {strides = array<i32>} : memref<16x32xf32, #tpu.memory_space<vmem>>, vector<2x32xf32>,
    %c2 = arith.constant 2 : index
    %c0_21 = arith.constant 0 : index
    %31 = vector.load %arg14[%c2, %c0_21] : memref<16x128xf32, #tpu.memory_space<vmem>>, vector<2x128xf32>
    %cst_22 = arith.constant dense<0.000000e+00> : vector<2x128xf32>
    %32 = tpu.matmul %29, %7, %cst_22 {dimension_numbers = #tpu.dot_dimension_numbers<[1], [0], [0], [1], [0, 0, 1, 1], [], []>} : vector<2x32xf32>, vector<32x128xf32>, vector<2x128xf32> -> vector<2x128xf32>
    %33 = arith.addf %32, %31 : vector<2x128xf32>
    %34 = arith.negf %33 : vector<2x128xf32>
    %35 = math.exp %34 : vector<2x128xf32>
    %cst_23 = arith.constant 1.000000e+00 : f32
    %36 = vector.broadcast %cst_23 : f32 to vector<2x128xf32>
    %37 = arith.addf %36, %35 : vector<2x128xf32>
    %38 = arith.divf %36, %37 : vector<2x128xf32>
    %39 = vector.extract_strided_slice %38 {offsets = [0, 0], sizes = [2, 32], strides = [1, 1]} : vector<2x128xf32> to vector<2x32xf32>
    %40 = vector.extract_strided_slice %38 {offsets = [0, 32], sizes = [2, 32], strides = [1, 1]} : vector<2x128xf32> to vector<2x32xf32>
    %41 = vector.extract_strided_slice %38 {offsets = [0, 96], sizes = [2, 32], strides = [1, 1]} : vector<2x128xf32> to vector<2x32xf32>
    %42 = vector.extract_strided_slice %33 {offsets = [0, 64], sizes = [2, 32], strides = [1, 1]} : vector<2x128xf32> to vector<2x32xf32>
    %43 = math.tanh %42 : vector<2x32xf32>
    %44 = arith.mulf %40, %27 : vector<2x32xf32>
    %45 = arith.mulf %39, %43 : vector<2x32xf32>
    %46 = arith.addf %44, %45 : vector<2x32xf32>
    %47 = math.tanh %46 : vector<2x32xf32>
    %48 = arith.mulf %41, %47 : vector<2x32xf32>
    %c2_24 = arith.constant 2 : index
    %c0_25 = arith.constant 0 : index
    %49 = vector.load %arg16[%c2_24, %c0_25] : memref<16x32xf32, #tpu.memory_space<vmem>>, vector<2x32xf32>
    tpu.vector_store %arg16[%c2_24, %c0_25], %48 {strides = array<i32>} : memref<16x32xf32, #tpu.memory_space<vmem>>, vector<2x32xf32>,
    %c4 = arith.constant 4 : index
    %c0_26 = arith.constant 0 : index
    %50 = vector.load %arg14[%c4, %c0_26] : memref<16x128xf32, #tpu.memory_space<vmem>>, vector<2x128xf32>
    %cst_27 = arith.constant dense<0.000000e+00> : vector<2x128xf32>
    %51 = tpu.matmul %48, %7, %cst_27 {dimension_numbers = #tpu.dot_dimension_numbers<[1], [0], [0], [1], [0, 0, 1, 1], [], []>} : vector<2x32xf32>, vector<32x128xf32>, vector<2x128xf32> -> vector<2x128xf32>
    %52 = arith.addf %51, %50 : vector<2x128xf32>
    %53 = arith.negf %52 : vector<2x128xf32>
    %54 = math.exp %53 : vector<2x128xf32>
    %cst_28 = arith.constant 1.000000e+00 : f32
    %55 = vector.broadcast %cst_28 : f32 to vector<2x128xf32>
    %56 = arith.addf %55, %54 : vector<2x128xf32>
    %57 = arith.divf %55, %56 : vector<2x128xf32>
    %58 = vector.extract_strided_slice %57 {offsets = [0, 0], sizes = [2, 32], strides = [1, 1]} : vector<2x128xf32> to vector<2x32xf32>
    %59 = vector.extract_strided_slice %57 {offsets = [0, 32], sizes = [2, 32], strides = [1, 1]} : vector<2x128xf32> to vector<2x32xf32>
    %60 = vector.extract_strided_slice %57 {offsets = [0, 96], sizes = [2, 32], strides = [1, 1]} : vector<2x128xf32> to vector<2x32xf32>
    %61 = vector.extract_strided_slice %52 {offsets = [0, 64], sizes = [2, 32], strides = [1, 1]} : vector<2x128xf32> to vector<2x32xf32>
    %62 = math.tanh %61 : vector<2x32xf32>
    %63 = arith.mulf %59, %46 : vector<2x32xf32>
    %64 = arith.mulf %58, %62 : vector<2x32xf32>
    %65 = arith.addf %63, %64 : vector<2x32xf32>
    %66 = math.tanh %65 : vector<2x32xf32>
    %67 = arith.mulf %60, %66 : vector<2x32xf32>
    %c4_29 = arith.constant 4 : index
    %c0_30 = arith.constant 0 : index
    %68 = vector.load %arg16[%c4_29, %c0_30] : memref<16x32xf32, #tpu.memory_space<vmem>>, vector<2x32xf32>
    tpu.vector_store %arg16[%c4_29, %c0_30], %67 {strides = array<i32>} : memref<16x32xf32, #tpu.memory_space<vmem>>, vector<2x32xf32>,
    %c6 = arith.constant 6 : index
    %c0_31 = arith.constant 0 : index
    %69 = vector.load %arg14[%c6, %c0_31] : memref<16x128xf32, #tpu.memory_space<vmem>>, vector<2x128xf32>
    %cst_32 = arith.constant dense<0.000000e+00> : vector<2x128xf32>
    %70 = tpu.matmul %67, %7, %cst_32 {dimension_numbers = #tpu.dot_dimension_numbers<[1], [0], [0], [1], [0, 0, 1, 1], [], []>} : vector<2x32xf32>, vector<32x128xf32>, vector<2x128xf32> -> vector<2x128xf32>
    %71 = arith.addf %70, %69 : vector<2x128xf32>
    %72 = arith.negf %71 : vector<2x128xf32>
    %73 = math.exp %72 : vector<2x128xf32>
    %cst_33 = arith.constant 1.000000e+00 : f32
    %74 = vector.broadcast %cst_33 : f32 to vector<2x128xf32>
    %75 = arith.addf %74, %73 : vector<2x128xf32>
    %76 = arith.divf %74, %75 : vector<2x128xf32>
    %77 = vector.extract_strided_slice %76 {offsets = [0, 0], sizes = [2, 32], strides = [1, 1]} : vector<2x128xf32> to vector<2x32xf32>
    %78 = vector.extract_strided_slice %76 {offsets = [0, 32], sizes = [2, 32], strides = [1, 1]} : vector<2x128xf32> to vector<2x32xf32>
    %79 = vector.extract_strided_slice %76 {offsets = [0, 96], sizes = [2, 32], strides = [1, 1]} : vector<2x128xf32> to vector<2x32xf32>
    %80 = vector.extract_strided_slice %71 {offsets = [0, 64], sizes = [2, 32], strides = [1, 1]} : vector<2x128xf32> to vector<2x32xf32>
    %81 = math.tanh %80 : vector<2x32xf32>
    %82 = arith.mulf %78, %65 : vector<2x32xf32>
    %83 = arith.mulf %77, %81 : vector<2x32xf32>
    %84 = arith.addf %82, %83 : vector<2x32xf32>
    %85 = math.tanh %84 : vector<2x32xf32>
    %86 = arith.mulf %79, %85 : vector<2x32xf32>
    %c6_34 = arith.constant 6 : index
    %c0_35 = arith.constant 0 : index
    %87 = vector.load %arg16[%c6_34, %c0_35] : memref<16x32xf32, #tpu.memory_space<vmem>>, vector<2x32xf32>
    tpu.vector_store %arg16[%c6_34, %c0_35], %86 {strides = array<i32>} : memref<16x32xf32, #tpu.memory_space<vmem>>, vector<2x32xf32>,
    %c8 = arith.constant 8 : index
    %c0_36 = arith.constant 0 : index
    %88 = vector.load %arg14[%c8, %c0_36] : memref<16x128xf32, #tpu.memory_space<vmem>>, vector<2x128xf32>
    %cst_37 = arith.constant dense<0.000000e+00> : vector<2x128xf32>
    %89 = tpu.matmul %86, %7, %cst_37 {dimension_numbers = #tpu.dot_dimension_numbers<[1], [0], [0], [1], [0, 0, 1, 1], [], []>} : vector<2x32xf32>, vector<32x128xf32>, vector<2x128xf32> -> vector<2x128xf32>
    %90 = arith.addf %89, %88 : vector<2x128xf32>
    %91 = arith.negf %90 : vector<2x128xf32>
    %92 = math.exp %91 : vector<2x128xf32>
    %cst_38 = arith.constant 1.000000e+00 : f32
    %93 = vector.broadcast %cst_38 : f32 to vector<2x128xf32>
    %94 = arith.addf %93, %92 : vector<2x128xf32>
    %95 = arith.divf %93, %94 : vector<2x128xf32>
    %96 = vector.extract_strided_slice %95 {offsets = [0, 0], sizes = [2, 32], strides = [1, 1]} : vector<2x128xf32> to vector<2x32xf32>
    %97 = vector.extract_strided_slice %95 {offsets = [0, 32], sizes = [2, 32], strides = [1, 1]} : vector<2x128xf32> to vector<2x32xf32>
    %98 = vector.extract_strided_slice %95 {offsets = [0, 96], sizes = [2, 32], strides = [1, 1]} : vector<2x128xf32> to vector<2x32xf32>
    %99 = vector.extract_strided_slice %90 {offsets = [0, 64], sizes = [2, 32], strides = [1, 1]} : vector<2x128xf32> to vector<2x32xf32>
    %100 = math.tanh %99 : vector<2x32xf32>
    %101 = arith.mulf %97, %84 : vector<2x32xf32>
    %102 = arith.mulf %96, %100 : vector<2x32xf32>
    %103 = arith.addf %101, %102 : vector<2x32xf32>
    %104 = math.tanh %103 : vector<2x32xf32>
    %105 = arith.mulf %98, %104 : vector<2x32xf32>
    %c8_39 = arith.constant 8 : index
    %c0_40 = arith.constant 0 : index
    %106 = vector.load %arg16[%c8_39, %c0_40] : memref<16x32xf32, #tpu.memory_space<vmem>>, vector<2x32xf32>
    tpu.vector_store %arg16[%c8_39, %c0_40], %105 {strides = array<i32>} : memref<16x32xf32, #tpu.memory_space<vmem>>, vector<2x32xf32>,
    %c10 = arith.constant 10 : index
    %c0_41 = arith.constant 0 : index
    %107 = vector.load %arg14[%c10, %c0_41] : memref<16x128xf32, #tpu.memory_space<vmem>>, vector<2x128xf32>
    %cst_42 = arith.constant dense<0.000000e+00> : vector<2x128xf32>
    %108 = tpu.matmul %105, %7, %cst_42 {dimension_numbers = #tpu.dot_dimension_numbers<[1], [0], [0], [1], [0, 0, 1, 1], [], []>} : vector<2x32xf32>, vector<32x128xf32>, vector<2x128xf32> -> vector<2x128xf32>
    %109 = arith.addf %108, %107 : vector<2x128xf32>
    %110 = arith.negf %109 : vector<2x128xf32>
    %111 = math.exp %110 : vector<2x128xf32>
    %cst_43 = arith.constant 1.000000e+00 : f32
    %112 = vector.broadcast %cst_43 : f32 to vector<2x128xf32>
    %113 = arith.addf %112, %111 : vector<2x128xf32>
    %114 = arith.divf %112, %113 : vector<2x128xf32>
    %115 = vector.extract_strided_slice %114 {offsets = [0, 0], sizes = [2, 32], strides = [1, 1]} : vector<2x128xf32> to vector<2x32xf32>
    %116 = vector.extract_strided_slice %114 {offsets = [0, 32], sizes = [2, 32], strides = [1, 1]} : vector<2x128xf32> to vector<2x32xf32>
    %117 = vector.extract_strided_slice %114 {offsets = [0, 96], sizes = [2, 32], strides = [1, 1]} : vector<2x128xf32> to vector<2x32xf32>
    %118 = vector.extract_strided_slice %109 {offsets = [0, 64], sizes = [2, 32], strides = [1, 1]} : vector<2x128xf32> to vector<2x32xf32>
    %119 = math.tanh %118 : vector<2x32xf32>
    %120 = arith.mulf %116, %103 : vector<2x32xf32>
    %121 = arith.mulf %115, %119 : vector<2x32xf32>
    %122 = arith.addf %120, %121 : vector<2x32xf32>
    %123 = math.tanh %122 : vector<2x32xf32>
    %124 = arith.mulf %117, %123 : vector<2x32xf32>
    %c10_44 = arith.constant 10 : index
    %c0_45 = arith.constant 0 : index
    %125 = vector.load %arg16[%c10_44, %c0_45] : memref<16x32xf32, #tpu.memory_space<vmem>>, vector<2x32xf32>
    tpu.vector_store %arg16[%c10_44, %c0_45], %124 {strides = array<i32>} : memref<16x32xf32, #tpu.memory_space<vmem>>, vector<2x32xf32>,
    %c12 = arith.constant 12 : index
    %c0_46 = arith.constant 0 : index
    %126 = vector.load %arg14[%c12, %c0_46] : memref<16x128xf32, #tpu.memory_space<vmem>>, vector<2x128xf32>
    %cst_47 = arith.constant dense<0.000000e+00> : vector<2x128xf32>
    %127 = tpu.matmul %124, %7, %cst_47 {dimension_numbers = #tpu.dot_dimension_numbers<[1], [0], [0], [1], [0, 0, 1, 1], [], []>} : vector<2x32xf32>, vector<32x128xf32>, vector<2x128xf32> -> vector<2x128xf32>
    %128 = arith.addf %127, %126 : vector<2x128xf32>
    %129 = arith.negf %128 : vector<2x128xf32>
    %130 = math.exp %129 : vector<2x128xf32>
    %cst_48 = arith.constant 1.000000e+00 : f32
    %131 = vector.broadcast %cst_48 : f32 to vector<2x128xf32>
    %132 = arith.addf %131, %130 : vector<2x128xf32>
    %133 = arith.divf %131, %132 : vector<2x128xf32>
    %134 = vector.extract_strided_slice %133 {offsets = [0, 0], sizes = [2, 32], strides = [1, 1]} : vector<2x128xf32> to vector<2x32xf32>
    %135 = vector.extract_strided_slice %133 {offsets = [0, 32], sizes = [2, 32], strides = [1, 1]} : vector<2x128xf32> to vector<2x32xf32>
    %136 = vector.extract_strided_slice %133 {offsets = [0, 96], sizes = [2, 32], strides = [1, 1]} : vector<2x128xf32> to vector<2x32xf32>
    %137 = vector.extract_strided_slice %128 {offsets = [0, 64], sizes = [2, 32], strides = [1, 1]} : vector<2x128xf32> to vector<2x32xf32>
    %138 = math.tanh %137 : vector<2x32xf32>
    %139 = arith.mulf %135, %122 : vector<2x32xf32>
    %140 = arith.mulf %134, %138 : vector<2x32xf32>
    %141 = arith.addf %139, %140 : vector<2x32xf32>
    %142 = math.tanh %141 : vector<2x32xf32>
    %143 = arith.mulf %136, %142 : vector<2x32xf32>
    %c12_49 = arith.constant 12 : index
    %c0_50 = arith.constant 0 : index
    %144 = vector.load %arg16[%c12_49, %c0_50] : memref<16x32xf32, #tpu.memory_space<vmem>>, vector<2x32xf32>
    tpu.vector_store %arg16[%c12_49, %c0_50], %143 {strides = array<i32>} : memref<16x32xf32, #tpu.memory_space<vmem>>, vector<2x32xf32>,
    %c14 = arith.constant 14 : index
    %c0_51 = arith.constant 0 : index
    %145 = vector.load %arg14[%c14, %c0_51] : memref<16x128xf32, #tpu.memory_space<vmem>>, vector<2x128xf32>
    %cst_52 = arith.constant dense<0.000000e+00> : vector<2x128xf32>
    %146 = tpu.matmul %143, %7, %cst_52 {dimension_numbers = #tpu.dot_dimension_numbers<[1], [0], [0], [1], [0, 0, 1, 1], [], []>} : vector<2x32xf32>, vector<32x128xf32>, vector<2x128xf32> -> vector<2x128xf32>
    %147 = arith.addf %146, %145 : vector<2x128xf32>
    %148 = arith.negf %147 : vector<2x128xf32>
    %149 = math.exp %148 : vector<2x128xf32>
    %cst_53 = arith.constant 1.000000e+00 : f32
    %150 = vector.broadcast %cst_53 : f32 to vector<2x128xf32>
    %151 = arith.addf %150, %149 : vector<2x128xf32>
    %152 = arith.divf %150, %151 : vector<2x128xf32>
    %153 = vector.extract_strided_slice %152 {offsets = [0, 0], sizes = [2, 32], strides = [1, 1]} : vector<2x128xf32> to vector<2x32xf32>
    %154 = vector.extract_strided_slice %152 {offsets = [0, 32], sizes = [2, 32], strides = [1, 1]} : vector<2x128xf32> to vector<2x32xf32>
    %155 = vector.extract_strided_slice %152 {offsets = [0, 96], sizes = [2, 32], strides = [1, 1]} : vector<2x128xf32> to vector<2x32xf32>
    %156 = vector.extract_strided_slice %147 {offsets = [0, 64], sizes = [2, 32], strides = [1, 1]} : vector<2x128xf32> to vector<2x32xf32>
    %157 = math.tanh %156 : vector<2x32xf32>
    %158 = arith.mulf %154, %141 : vector<2x32xf32>
    %159 = arith.mulf %153, %157 : vector<2x32xf32>
    %160 = arith.addf %158, %159 : vector<2x32xf32>
    %161 = math.tanh %160 : vector<2x32xf32>
    %162 = arith.mulf %155, %161 : vector<2x32xf32>
    %c14_54 = arith.constant 14 : index
    %c0_55 = arith.constant 0 : index
    %163 = vector.load %arg16[%c14_54, %c0_55] : memref<16x32xf32, #tpu.memory_space<vmem>>, vector<2x32xf32>
    tpu.vector_store %arg16[%c14_54, %c0_55], %162 {strides = array<i32>} : memref<16x32xf32, #tpu.memory_space<vmem>>, vector<2x32xf32>,
    %c0_56 = arith.constant 0 : index
    %c0_57 = arith.constant 0 : index
    %164 = vector.load %arg16[%c0_56, %c0_57] : memref<16x32xf32, #tpu.memory_space<vmem>>, vector<16x32xf32>
    %c0_58 = arith.constant 0 : index
    %c0_59 = arith.constant 0 : index
    %165 = vector.load %arg4[%c0_58, %c0_59] : memref<32x128xf32, #tpu.memory_space<vmem>>, vector<32x128xf32>
    %cst_60 = arith.constant dense<0.000000e+00> : vector<16x128xf32>
    %166 = tpu.matmul %164, %165, %cst_60 {dimension_numbers = #tpu.dot_dimension_numbers<[1], [0], [0], [1], [0, 0, 1, 1], [], []>} : vector<16x32xf32>, vector<32x128xf32>, vector<16x128xf32> -> vector<16x128xf32>
    %c0_61 = arith.constant 0 : index
    %c0_62 = arith.constant 0 : index
    %167 = vector.load %arg6[%c0_61, %c0_62] : memref<1x128xf32, #tpu.memory_space<vmem>>, vector<1x128xf32>
    %168 = vector.broadcast %167 : vector<1x128xf32> to vector<16x128xf32>
    %169 = arith.addf %166, %168 : vector<16x128xf32>
    %c0_63 = arith.constant 0 : index
    %c0_64 = arith.constant 0 : index
    %170 = vector.load %arg15[%c0_63, %c0_64] : memref<16x128xf32, #tpu.memory_space<vmem>>, vector<16x128xf32>
    tpu.vector_store %arg15[%c0_63, %c0_64], %169 {strides = array<i32>} : memref<16x128xf32, #tpu.memory_space<vmem>>, vector<16x128xf32>,
    %c0_65 = arith.constant 0 : index
    %c0_66 = arith.constant 0 : index
    %171 = vector.load %arg5[%c0_65, %c0_66] : memref<32x128xf32, #tpu.memory_space<vmem>>, vector<32x128xf32>
    %c1 = arith.constant 1 : index
    %c0_67 = arith.constant 0 : index
    %c0_68 = arith.constant 0 : index
    %172 = vector.load %arg9[%c1, %c0_67, %c0_68] : memref<2x2x32xf32, #tpu.memory_space<vmem>>, vector<1x2x32xf32>
    %173 = vector.shape_cast %172 : vector<1x2x32xf32> to vector<2x32xf32>
    %c1_69 = arith.constant 1 : index
    %c0_70 = arith.constant 0 : index
    %c0_71 = arith.constant 0 : index
    %174 = vector.load %arg10[%c1_69, %c0_70, %c0_71] : memref<2x2x32xf32, #tpu.memory_space<vmem>>, vector<1x2x32xf32>
    %175 = vector.shape_cast %174 : vector<1x2x32xf32> to vector<2x32xf32>
    %c0_72 = arith.constant 0 : index
    %c0_73 = arith.constant 0 : index
    %176 = vector.load %arg15[%c0_72, %c0_73] : memref<16x128xf32, #tpu.memory_space<vmem>>, vector<2x128xf32>
    %cst_74 = arith.constant dense<0.000000e+00> : vector<2x128xf32>
    %177 = tpu.matmul %173, %171, %cst_74 {dimension_numbers = #tpu.dot_dimension_numbers<[1], [0], [0], [1], [0, 0, 1, 1], [], []>} : vector<2x32xf32>, vector<32x128xf32>, vector<2x128xf32> -> vector<2x128xf32>
    %178 = arith.addf %177, %176 : vector<2x128xf32>
    %179 = arith.negf %178 : vector<2x128xf32>
    %180 = math.exp %179 : vector<2x128xf32>
    %cst_75 = arith.constant 1.000000e+00 : f32
    %181 = vector.broadcast %cst_75 : f32 to vector<2x128xf32>
    %182 = arith.addf %181, %180 : vector<2x128xf32>
    %183 = arith.divf %181, %182 : vector<2x128xf32>
    %184 = vector.extract_strided_slice %183 {offsets = [0, 0], sizes = [2, 32], strides = [1, 1]} : vector<2x128xf32> to vector<2x32xf32>
    %185 = vector.extract_strided_slice %183 {offsets = [0, 32], sizes = [2, 32], strides = [1, 1]} : vector<2x128xf32> to vector<2x32xf32>
    %186 = vector.extract_strided_slice %183 {offsets = [0, 96], sizes = [2, 32], strides = [1, 1]} : vector<2x128xf32> to vector<2x32xf32>
    %187 = vector.extract_strided_slice %178 {offsets = [0, 64], sizes = [2, 32], strides = [1, 1]} : vector<2x128xf32> to vector<2x32xf32>
    %188 = math.tanh %187 : vector<2x32xf32>
    %189 = arith.mulf %185, %175 : vector<2x32xf32>
    %190 = arith.mulf %184, %188 : vector<2x32xf32>
    %191 = arith.addf %189, %190 : vector<2x32xf32>
    %192 = math.tanh %191 : vector<2x32xf32>
    %193 = arith.mulf %186, %192 : vector<2x32xf32>
    %c0_76 = arith.constant 0 : index
    %c0_77 = arith.constant 0 : index
    %194 = vector.load %arg17[%c0_76, %c0_77] : memref<16x32xf32, #tpu.memory_space<vmem>>, vector<2x32xf32>
    tpu.vector_store %arg17[%c0_76, %c0_77], %193 {strides = array<i32>} : memref<16x32xf32, #tpu.memory_space<vmem>>, vector<2x32xf32>,
    %c2_78 = arith.constant 2 : index
    %c0_79 = arith.constant 0 : index
    %195 = vector.load %arg15[%c2_78, %c0_79] : memref<16x128xf32, #tpu.memory_space<vmem>>, vector<2x128xf32>
    %cst_80 = arith.constant dense<0.000000e+00> : vector<2x128xf32>
    %196 = tpu.matmul %193, %171, %cst_80 {dimension_numbers = #tpu.dot_dimension_numbers<[1], [0], [0], [1], [0, 0, 1, 1], [], []>} : vector<2x32xf32>, vector<32x128xf32>, vector<2x128xf32> -> vector<2x128xf32>
    %197 = arith.addf %196, %195 : vector<2x128xf32>
    %198 = arith.negf %197 : vector<2x128xf32>
    %199 = math.exp %198 : vector<2x128xf32>
    %cst_81 = arith.constant 1.000000e+00 : f32
    %200 = vector.broadcast %cst_81 : f32 to vector<2x128xf32>
    %201 = arith.addf %200, %199 : vector<2x128xf32>
    %202 = arith.divf %200, %201 : vector<2x128xf32>
    %203 = vector.extract_strided_slice %202 {offsets = [0, 0], sizes = [2, 32], strides = [1, 1]} : vector<2x128xf32> to vector<2x32xf32>
    %204 = vector.extract_strided_slice %202 {offsets = [0, 32], sizes = [2, 32], strides = [1, 1]} : vector<2x128xf32> to vector<2x32xf32>
    %205 = vector.extract_strided_slice %202 {offsets = [0, 96], sizes = [2, 32], strides = [1, 1]} : vector<2x128xf32> to vector<2x32xf32>
    %206 = vector.extract_strided_slice %197 {offsets = [0, 64], sizes = [2, 32], strides = [1, 1]} : vector<2x128xf32> to vector<2x32xf32>
    %207 = math.tanh %206 : vector<2x32xf32>
    %208 = arith.mulf %204, %191 : vector<2x32xf32>
    %209 = arith.mulf %203, %207 : vector<2x32xf32>
    %210 = arith.addf %208, %209 : vector<2x32xf32>
    %211 = math.tanh %210 : vector<2x32xf32>
    %212 = arith.mulf %205, %211 : vector<2x32xf32>
    %c2_82 = arith.constant 2 : index
    %c0_83 = arith.constant 0 : index
    %213 = vector.load %arg17[%c2_82, %c0_83] : memref<16x32xf32, #tpu.memory_space<vmem>>, vector<2x32xf32>
    tpu.vector_store %arg17[%c2_82, %c0_83], %212 {strides = array<i32>} : memref<16x32xf32, #tpu.memory_space<vmem>>, vector<2x32xf32>,
    %c4_84 = arith.constant 4 : index
    %c0_85 = arith.constant 0 : index
    %214 = vector.load %arg15[%c4_84, %c0_85] : memref<16x128xf32, #tpu.memory_space<vmem>>, vector<2x128xf32>
    %cst_86 = arith.constant dense<0.000000e+00> : vector<2x128xf32>
    %215 = tpu.matmul %212, %171, %cst_86 {dimension_numbers = #tpu.dot_dimension_numbers<[1], [0], [0], [1], [0, 0, 1, 1], [], []>} : vector<2x32xf32>, vector<32x128xf32>, vector<2x128xf32> -> vector<2x128xf32>
    %216 = arith.addf %215, %214 : vector<2x128xf32>
    %217 = arith.negf %216 : vector<2x128xf32>
    %218 = math.exp %217 : vector<2x128xf32>
    %cst_87 = arith.constant 1.000000e+00 : f32
    %219 = vector.broadcast %cst_87 : f32 to vector<2x128xf32>
    %220 = arith.addf %219, %218 : vector<2x128xf32>
    %221 = arith.divf %219, %220 : vector<2x128xf32>
    %222 = vector.extract_strided_slice %221 {offsets = [0, 0], sizes = [2, 32], strides = [1, 1]} : vector<2x128xf32> to vector<2x32xf32>
    %223 = vector.extract_strided_slice %221 {offsets = [0, 32], sizes = [2, 32], strides = [1, 1]} : vector<2x128xf32> to vector<2x32xf32>
    %224 = vector.extract_strided_slice %221 {offsets = [0, 96], sizes = [2, 32], strides = [1, 1]} : vector<2x128xf32> to vector<2x32xf32>
    %225 = vector.extract_strided_slice %216 {offsets = [0, 64], sizes = [2, 32], strides = [1, 1]} : vector<2x128xf32> to vector<2x32xf32>
    %226 = math.tanh %225 : vector<2x32xf32>
    %227 = arith.mulf %223, %210 : vector<2x32xf32>
    %228 = arith.mulf %222, %226 : vector<2x32xf32>
    %229 = arith.addf %227, %228 : vector<2x32xf32>
    %230 = math.tanh %229 : vector<2x32xf32>
    %231 = arith.mulf %224, %230 : vector<2x32xf32>
    %c4_88 = arith.constant 4 : index
    %c0_89 = arith.constant 0 : index
    %232 = vector.load %arg17[%c4_88, %c0_89] : memref<16x32xf32, #tpu.memory_space<vmem>>, vector<2x32xf32>
    tpu.vector_store %arg17[%c4_88, %c0_89], %231 {strides = array<i32>} : memref<16x32xf32, #tpu.memory_space<vmem>>, vector<2x32xf32>,
    %c6_90 = arith.constant 6 : index
    %c0_91 = arith.constant 0 : index
    %233 = vector.load %arg15[%c6_90, %c0_91] : memref<16x128xf32, #tpu.memory_space<vmem>>, vector<2x128xf32>
    %cst_92 = arith.constant dense<0.000000e+00> : vector<2x128xf32>
    %234 = tpu.matmul %231, %171, %cst_92 {dimension_numbers = #tpu.dot_dimension_numbers<[1], [0], [0], [1], [0, 0, 1, 1], [], []>} : vector<2x32xf32>, vector<32x128xf32>, vector<2x128xf32> -> vector<2x128xf32>
    %235 = arith.addf %234, %233 : vector<2x128xf32>
    %236 = arith.negf %235 : vector<2x128xf32>
    %237 = math.exp %236 : vector<2x128xf32>
    %cst_93 = arith.constant 1.000000e+00 : f32
    %238 = vector.broadcast %cst_93 : f32 to vector<2x128xf32>
    %239 = arith.addf %238, %237 : vector<2x128xf32>
    %240 = arith.divf %238, %239 : vector<2x128xf32>
    %241 = vector.extract_strided_slice %240 {offsets = [0, 0], sizes = [2, 32], strides = [1, 1]} : vector<2x128xf32> to vector<2x32xf32>
    %242 = vector.extract_strided_slice %240 {offsets = [0, 32], sizes = [2, 32], strides = [1, 1]} : vector<2x128xf32> to vector<2x32xf32>
    %243 = vector.extract_strided_slice %240 {offsets = [0, 96], sizes = [2, 32], strides = [1, 1]} : vector<2x128xf32> to vector<2x32xf32>
    %244 = vector.extract_strided_slice %235 {offsets = [0, 64], sizes = [2, 32], strides = [1, 1]} : vector<2x128xf32> to vector<2x32xf32>
    %245 = math.tanh %244 : vector<2x32xf32>
    %246 = arith.mulf %242, %229 : vector<2x32xf32>
    %247 = arith.mulf %241, %245 : vector<2x32xf32>
    %248 = arith.addf %246, %247 : vector<2x32xf32>
    %249 = math.tanh %248 : vector<2x32xf32>
    %250 = arith.mulf %243, %249 : vector<2x32xf32>
    %c6_94 = arith.constant 6 : index
    %c0_95 = arith.constant 0 : index
    %251 = vector.load %arg17[%c6_94, %c0_95] : memref<16x32xf32, #tpu.memory_space<vmem>>, vector<2x32xf32>
    tpu.vector_store %arg17[%c6_94, %c0_95], %250 {strides = array<i32>} : memref<16x32xf32, #tpu.memory_space<vmem>>, vector<2x32xf32>,
    %c8_96 = arith.constant 8 : index
    %c0_97 = arith.constant 0 : index
    %252 = vector.load %arg15[%c8_96, %c0_97] : memref<16x128xf32, #tpu.memory_space<vmem>>, vector<2x128xf32>
    %cst_98 = arith.constant dense<0.000000e+00> : vector<2x128xf32>
    %253 = tpu.matmul %250, %171, %cst_98 {dimension_numbers = #tpu.dot_dimension_numbers<[1], [0], [0], [1], [0, 0, 1, 1], [], []>} : vector<2x32xf32>, vector<32x128xf32>, vector<2x128xf32> -> vector<2x128xf32>
    %254 = arith.addf %253, %252 : vector<2x128xf32>
    %255 = arith.negf %254 : vector<2x128xf32>
    %256 = math.exp %255 : vector<2x128xf32>
    %cst_99 = arith.constant 1.000000e+00 : f32
    %257 = vector.broadcast %cst_99 : f32 to vector<2x128xf32>
    %258 = arith.addf %257, %256 : vector<2x128xf32>
    %259 = arith.divf %257, %258 : vector<2x128xf32>
    %260 = vector.extract_strided_slice %259 {offsets = [0, 0], sizes = [2, 32], strides = [1, 1]} : vector<2x128xf32> to vector<2x32xf32>
    %261 = vector.extract_strided_slice %259 {offsets = [0, 32], sizes = [2, 32], strides = [1, 1]} : vector<2x128xf32> to vector<2x32xf32>
    %262 = vector.extract_strided_slice %259 {offsets = [0, 96], sizes = [2, 32], strides = [1, 1]} : vector<2x128xf32> to vector<2x32xf32>
    %263 = vector.extract_strided_slice %254 {offsets = [0, 64], sizes = [2, 32], strides = [1, 1]} : vector<2x128xf32> to vector<2x32xf32>
    %264 = math.tanh %263 : vector<2x32xf32>
    %265 = arith.mulf %261, %248 : vector<2x32xf32>
    %266 = arith.mulf %260, %264 : vector<2x32xf32>
    %267 = arith.addf %265, %266 : vector<2x32xf32>
    %268 = math.tanh %267 : vector<2x32xf32>
    %269 = arith.mulf %262, %268 : vector<2x32xf32>
    %c8_100 = arith.constant 8 : index
    %c0_101 = arith.constant 0 : index
    %270 = vector.load %arg17[%c8_100, %c0_101] : memref<16x32xf32, #tpu.memory_space<vmem>>, vector<2x32xf32>
    tpu.vector_store %arg17[%c8_100, %c0_101], %269 {strides = array<i32>} : memref<16x32xf32, #tpu.memory_space<vmem>>, vector<2x32xf32>,
    %c10_102 = arith.constant 10 : index
    %c0_103 = arith.constant 0 : index
    %271 = vector.load %arg15[%c10_102, %c0_103] : memref<16x128xf32, #tpu.memory_space<vmem>>, vector<2x128xf32>
    %cst_104 = arith.constant dense<0.000000e+00> : vector<2x128xf32>
    %272 = tpu.matmul %269, %171, %cst_104 {dimension_numbers = #tpu.dot_dimension_numbers<[1], [0], [0], [1], [0, 0, 1, 1], [], []>} : vector<2x32xf32>, vector<32x128xf32>, vector<2x128xf32> -> vector<2x128xf32>
    %273 = arith.addf %272, %271 : vector<2x128xf32>
    %274 = arith.negf %273 : vector<2x128xf32>
    %275 = math.exp %274 : vector<2x128xf32>
    %cst_105 = arith.constant 1.000000e+00 : f32
    %276 = vector.broadcast %cst_105 : f32 to vector<2x128xf32>
    %277 = arith.addf %276, %275 : vector<2x128xf32>
    %278 = arith.divf %276, %277 : vector<2x128xf32>
    %279 = vector.extract_strided_slice %278 {offsets = [0, 0], sizes = [2, 32], strides = [1, 1]} : vector<2x128xf32> to vector<2x32xf32>
    %280 = vector.extract_strided_slice %278 {offsets = [0, 32], sizes = [2, 32], strides = [1, 1]} : vector<2x128xf32> to vector<2x32xf32>
    %281 = vector.extract_strided_slice %278 {offsets = [0, 96], sizes = [2, 32], strides = [1, 1]} : vector<2x128xf32> to vector<2x32xf32>
    %282 = vector.extract_strided_slice %273 {offsets = [0, 64], sizes = [2, 32], strides = [1, 1]} : vector<2x128xf32> to vector<2x32xf32>
    %283 = math.tanh %282 : vector<2x32xf32>
    %284 = arith.mulf %280, %267 : vector<2x32xf32>
    %285 = arith.mulf %279, %283 : vector<2x32xf32>
    %286 = arith.addf %284, %285 : vector<2x32xf32>
    %287 = math.tanh %286 : vector<2x32xf32>
    %288 = arith.mulf %281, %287 : vector<2x32xf32>
    %c10_106 = arith.constant 10 : index
    %c0_107 = arith.constant 0 : index
    %289 = vector.load %arg17[%c10_106, %c0_107] : memref<16x32xf32, #tpu.memory_space<vmem>>, vector<2x32xf32>
    tpu.vector_store %arg17[%c10_106, %c0_107], %288 {strides = array<i32>} : memref<16x32xf32, #tpu.memory_space<vmem>>, vector<2x32xf32>,
    %c12_108 = arith.constant 12 : index
    %c0_109 = arith.constant 0 : index
    %290 = vector.load %arg15[%c12_108, %c0_109] : memref<16x128xf32, #tpu.memory_space<vmem>>, vector<2x128xf32>
    %cst_110 = arith.constant dense<0.000000e+00> : vector<2x128xf32>
    %291 = tpu.matmul %288, %171, %cst_110 {dimension_numbers = #tpu.dot_dimension_numbers<[1], [0], [0], [1], [0, 0, 1, 1], [], []>} : vector<2x32xf32>, vector<32x128xf32>, vector<2x128xf32> -> vector<2x128xf32>
    %292 = arith.addf %291, %290 : vector<2x128xf32>
    %293 = arith.negf %292 : vector<2x128xf32>
    %294 = math.exp %293 : vector<2x128xf32>
    %cst_111 = arith.constant 1.000000e+00 : f32
    %295 = vector.broadcast %cst_111 : f32 to vector<2x128xf32>
    %296 = arith.addf %295, %294 : vector<2x128xf32>
    %297 = arith.divf %295, %296 : vector<2x128xf32>
    %298 = vector.extract_strided_slice %297 {offsets = [0, 0], sizes = [2, 32], strides = [1, 1]} : vector<2x128xf32> to vector<2x32xf32>
    %299 = vector.extract_strided_slice %297 {offsets = [0, 32], sizes = [2, 32], strides = [1, 1]} : vector<2x128xf32> to vector<2x32xf32>
    %300 = vector.extract_strided_slice %297 {offsets = [0, 96], sizes = [2, 32], strides = [1, 1]} : vector<2x128xf32> to vector<2x32xf32>
    %301 = vector.extract_strided_slice %292 {offsets = [0, 64], sizes = [2, 32], strides = [1, 1]} : vector<2x128xf32> to vector<2x32xf32>
    %302 = math.tanh %301 : vector<2x32xf32>
    %303 = arith.mulf %299, %286 : vector<2x32xf32>
    %304 = arith.mulf %298, %302 : vector<2x32xf32>
    %305 = arith.addf %303, %304 : vector<2x32xf32>
    %306 = math.tanh %305 : vector<2x32xf32>
    %307 = arith.mulf %300, %306 : vector<2x32xf32>
    %c12_112 = arith.constant 12 : index
    %c0_113 = arith.constant 0 : index
    %308 = vector.load %arg17[%c12_112, %c0_113] : memref<16x32xf32, #tpu.memory_space<vmem>>, vector<2x32xf32>
    tpu.vector_store %arg17[%c12_112, %c0_113], %307 {strides = array<i32>} : memref<16x32xf32, #tpu.memory_space<vmem>>, vector<2x32xf32>,
    %c14_114 = arith.constant 14 : index
    %c0_115 = arith.constant 0 : index
    %309 = vector.load %arg15[%c14_114, %c0_115] : memref<16x128xf32, #tpu.memory_space<vmem>>, vector<2x128xf32>
    %cst_116 = arith.constant dense<0.000000e+00> : vector<2x128xf32>
    %310 = tpu.matmul %307, %171, %cst_116 {dimension_numbers = #tpu.dot_dimension_numbers<[1], [0], [0], [1], [0, 0, 1, 1], [], []>} : vector<2x32xf32>, vector<32x128xf32>, vector<2x128xf32> -> vector<2x128xf32>
    %311 = arith.addf %310, %309 : vector<2x128xf32>
    %312 = arith.negf %311 : vector<2x128xf32>
    %313 = math.exp %312 : vector<2x128xf32>
    %cst_117 = arith.constant 1.000000e+00 : f32
    %314 = vector.broadcast %cst_117 : f32 to vector<2x128xf32>
    %315 = arith.addf %314, %313 : vector<2x128xf32>
    %316 = arith.divf %314, %315 : vector<2x128xf32>
    %317 = vector.extract_strided_slice %316 {offsets = [0, 0], sizes = [2, 32], strides = [1, 1]} : vector<2x128xf32> to vector<2x32xf32>
    %318 = vector.extract_strided_slice %316 {offsets = [0, 32], sizes = [2, 32], strides = [1, 1]} : vector<2x128xf32> to vector<2x32xf32>
    %319 = vector.extract_strided_slice %316 {offsets = [0, 96], sizes = [2, 32], strides = [1, 1]} : vector<2x128xf32> to vector<2x32xf32>
    %320 = vector.extract_strided_slice %311 {offsets = [0, 64], sizes = [2, 32], strides = [1, 1]} : vector<2x128xf32> to vector<2x32xf32>
    %321 = math.tanh %320 : vector<2x32xf32>
    %322 = arith.mulf %318, %305 : vector<2x32xf32>
    %323 = arith.mulf %317, %321 : vector<2x32xf32>
    %324 = arith.addf %322, %323 : vector<2x32xf32>
    %325 = math.tanh %324 : vector<2x32xf32>
    %326 = arith.mulf %319, %325 : vector<2x32xf32>
    %c14_118 = arith.constant 14 : index
    %c0_119 = arith.constant 0 : index
    %327 = vector.load %arg17[%c14_118, %c0_119] : memref<16x32xf32, #tpu.memory_space<vmem>>, vector<2x32xf32>
    tpu.vector_store %arg17[%c14_118, %c0_119], %326 {strides = array<i32>} : memref<16x32xf32, #tpu.memory_space<vmem>>, vector<2x32xf32>,
    %c0_120 = arith.constant 0 : index
    %c0_121 = arith.constant 0 : index
    %328 = vector.load %arg17[%c0_120, %c0_121] : memref<16x32xf32, #tpu.memory_space<vmem>>, vector<16x32xf32>
    %c0_122 = arith.constant 0 : index
    %c0_123 = arith.constant 0 : index
    %329 = vector.load %arg7[%c0_122, %c0_123] : memref<32x64xf32, #tpu.memory_space<vmem>>, vector<32x64xf32>
    %cst_124 = arith.constant dense<0.000000e+00> : vector<16x64xf32>
    %330 = tpu.matmul %328, %329, %cst_124 {dimension_numbers = #tpu.dot_dimension_numbers<[1], [0], [0], [1], [0, 0, 1, 1], [], []>} : vector<16x32xf32>, vector<32x64xf32>, vector<16x64xf32> -> vector<16x64xf32>
    %c0_125 = arith.constant 0 : index
    %c0_126 = arith.constant 0 : index
    %331 = vector.load %arg8[%c0_125, %c0_126] : memref<1x64xf32, #tpu.memory_space<vmem>>, vector<1x64xf32>
    %332 = vector.broadcast %331 : vector<1x64xf32> to vector<16x64xf32>
    %333 = arith.addf %330, %332 : vector<16x64xf32>
    %c0_127 = arith.constant 0 : index
    %c0_128 = arith.constant 0 : index
    %334 = vector.load %arg11[%c0_127, %c0_128] : memref<16x64xf32, #tpu.memory_space<vmem>>, vector<16x64xf32>
    tpu.vector_store %arg11[%c0_127, %c0_128], %333 {strides = array<i32>} : memref<16x64xf32, #tpu.memory_space<vmem>>, vector<16x64xf32>,
    %c0_129 = arith.constant 0 : index
    %c0_130 = arith.constant 0 : index
    %c0_131 = arith.constant 0 : index
    %335 = vector.load %arg12[%c0_129, %c0_130, %c0_131] : memref<2x2x32xf32, #tpu.memory_space<vmem>>, vector<1x2x32xf32>
    %336 = vector.shape_cast %335 : vector<1x2x32xf32> to vector<2x32xf32>
    %337 = vector.shape_cast %162 : vector<2x32xf32> to vector<1x2x32xf32>
    tpu.vector_store %arg12[%c0_129, %c0_130, %c0_131], %337 {strides = array<i32>} : memref<2x2x32xf32, #tpu.memory_space<vmem>>, vector<1x2x32xf32>,
    %c1_132 = arith.constant 1 : index
    %c0_133 = arith.constant 0 : index
    %c0_134 = arith.constant 0 : index
    %338 = vector.load %arg12[%c1_132, %c0_133, %c0_134] : memref<2x2x32xf32, #tpu.memory_space<vmem>>, vector<1x2x32xf32>
    %339 = vector.shape_cast %338 : vector<1x2x32xf32> to vector<2x32xf32>
    %340 = vector.shape_cast %326 : vector<2x32xf32> to vector<1x2x32xf32>
    tpu.vector_store %arg12[%c1_132, %c0_133, %c0_134], %340 {strides = array<i32>} : memref<2x2x32xf32, #tpu.memory_space<vmem>>, vector<1x2x32xf32>,
    %c0_135 = arith.constant 0 : index
    %c0_136 = arith.constant 0 : index
    %c0_137 = arith.constant 0 : index
    %341 = vector.load %arg13[%c0_135, %c0_136, %c0_137] : memref<2x2x32xf32, #tpu.memory_space<vmem>>, vector<1x2x32xf32>
    %342 = vector.shape_cast %341 : vector<1x2x32xf32> to vector<2x32xf32>
    %343 = vector.shape_cast %160 : vector<2x32xf32> to vector<1x2x32xf32>
    tpu.vector_store %arg13[%c0_135, %c0_136, %c0_137], %343 {strides = array<i32>} : memref<2x2x32xf32, #tpu.memory_space<vmem>>, vector<1x2x32xf32>,
    %c1_138 = arith.constant 1 : index
    %c0_139 = arith.constant 0 : index
    %c0_140 = arith.constant 0 : index
    %344 = vector.load %arg13[%c1_138, %c0_139, %c0_140] : memref<2x2x32xf32, #tpu.memory_space<vmem>>, vector<1x2x32xf32>
    %345 = vector.shape_cast %344 : vector<1x2x32xf32> to vector<2x32xf32>
    %346 = vector.shape_cast %324 : vector<2x32xf32> to vector<1x2x32xf32>
    tpu.vector_store %arg13[%c1_138, %c0_139, %c0_140], %346 {strides = array<i32>} : memref<2x2x32xf32, #tpu.memory_space<vmem>>, vector<1x2x32xf32>,
    return
  }
}

</mosaic_0001>

<llo_original>
// kernel: tpu_custom_call.1
$region0: #{tpu_custom_call.1}
  #allocation0 [shape = 'u32[]', space=smem, size = 0x4, offset = 0x4, fixed_abs, tag = 'smem constant byte address 0x4 - core index']
  #allocation1 [shape = 'u32[144,128]{1,0:T(1,128)}', space=vmem, size = 0x12000, scoped, tag = 'internal scratch']
  #allocation2 [shape = 'f32[16,128]{1,0:T(8,128)}', space=vmem, size = 0x2000, scoped, tag = 'scratch operand']
  #allocation3 [shape = 'f32[16,128]{1,0:T(8,128)}', space=vmem, size = 0x2000, scoped, tag = 'scratch operand']
  #allocation4 [shape = 'f32[16,32]{1,0:T(8,128)}', space=vmem, size = 0x2000, scoped, tag = 'scratch operand']
  #allocation5 [shape = 'f32[16,32]{1,0:T(8,128)}', space=vmem, size = 0x2000, scoped, tag = 'scratch operand']
  %s0 = inlined_call_operand.hbm [shape: f32[16,32], index: 0, kind: input, shape index: {}]
  %s1 = inlined_call_operand.hbm [shape: f32[32,128], index: 1, kind: input, shape index: {}]
  %s2 = inlined_call_operand.hbm [shape: f32[32,128], index: 2, kind: input, shape index: {}]
  %s3 = inlined_call_operand.vmem [shape: f32[1,128], index: 3, kind: input, shape index: {}]
  %s4 = inlined_call_operand.hbm [shape: f32[32,128], index: 4, kind: input, shape index: {}]
  %s5 = inlined_call_operand.hbm [shape: f32[32,128], index: 5, kind: input, shape index: {}]
  %s6 = inlined_call_operand.vmem [shape: f32[1,128], index: 6, kind: input, shape index: {}]
  %s7 = inlined_call_operand.hbm [shape: f32[32,64], index: 7, kind: input, shape index: {}]
  %s8 = inlined_call_operand.vmem [shape: f32[1,64], index: 8, kind: input, shape index: {}]
  %s9 = inlined_call_operand.vmem [shape: f32[2,2,32], index: 9, kind: input, shape index: {}]
  %s10 = inlined_call_operand.vmem [shape: f32[2,2,32], index: 10, kind: input, shape index: {}]
  %s11 = inlined_call_operand.hbm [shape: f32[16,64], index: 11, kind: output, shape index: {0}]
  %s12 = inlined_call_operand.hbm [shape: f32[2,2,32], index: 12, kind: output, shape index: {1}]
  %s13 = inlined_call_operand.hbm [shape: f32[2,2,32], index: 13, kind: output, shape index: {2}]
  %14 = xla_tuple %s11, %s12, %s13
  %s15 = sld [smem:[#allocation0]]
  $region94: #{tpu_custom_call.1} parent=0
    _
  %s17 = ssub.s32 1, %s15
  %s18 = scalar_select 0, %s17, %s15
  $region1: #{tpu_custom_call.1} parent=0
    #allocation6 [shape = 'u8[8192]{0}', space=vmem, size = 0x2000, scoped, tag = 'input window, operand 0, single buffered']
    #allocation7 [shape = 's32[1]{0}', space=sflag, size = 0x4, scoped, tag = 'scoped memory for tpu_custom_call.1']
    #allocation8 [shape = 's32[1]{0}', space=sflag, size = 0x4, scoped, tag = 'scoped memory for tpu_custom_call.1']
    #allocation9 [shape = 'u8[16384]{0}', space=vmem, size = 0x4000, scoped, tag = 'input window, operand 1, single buffered']
    #allocation10 [shape = 's32[1]{0}', space=sflag, size = 0x4, scoped, tag = 'scoped memory for tpu_custom_call.1']
    #allocation11 [shape = 'u8[16384]{0}', space=vmem, size = 0x4000, scoped, tag = 'input window, operand 2, single buffered']
    #allocation12 [shape = 'u8[16384]{0}', space=vmem, size = 0x4000, scoped, tag = 'input window, operand 4, single buffered']
    #allocation13 [shape = 's32[1]{0}', space=sflag, size = 0x4, scoped, tag = 'scoped memory for tpu_custom_call.1']
    #allocation14 [shape = 'u8[16384]{0}', space=vmem, size = 0x4000, scoped, tag = 'input window, operand 5, single buffered']
    #allocation15 [shape = 'u8[16384]{0}', space=vmem, size = 0x4000, scoped, tag = 'input window, operand 7, single buffered']
    #allocation16 [shape = 's32[1]{0}', space=sflag, size = 0x4, scoped, tag = 'scoped memory for tpu_custom_call.1']
    #allocation17 [shape = 'u8[8192]{0}', space=vmem, size = 0x2000, scoped, tag = 'output window, operand 0, single buffered']
    #allocation18 [shape = 'u8[2048]{0}', space=vmem, size = 0x800, scoped, tag = 'output window, operand 1, single buffered']
    #allocation19 [shape = 's32[1]{0}', space=sflag, size = 0x4, scoped, tag = 'scoped memory for tpu_custom_call.1']
    #allocation20 [shape = 'u8[2048]{0}', space=vmem, size = 0x800, scoped, tag = 'output window, operand 2, single buffered']
    %19 = vsyncpa [#allocation7], 0
    %20 = vsyncpa [#allocation10], 0
    %21 = vsyncpa [#allocation13], 0
    %22 = vsyncpa [#allocation16], 0
    %23 = vsyncpa [#allocation8], 0
    %24 = vsyncpa [#allocation19], 0
    // Predicated region
    $region2: #{tpu_custom_call.1} parent=1 // pred_check
      _
    $region3: #{tpu_custom_call.1} parent=1 // pred_check_branch
      %26 = sbr.rel (0) target = $region5
    $region4: #{tpu_custom_call.1} parent=1 // pred_region
      %s28 = ssub.s32 256, 256
      %29 = vsyncadd [#allocation7], %s28
      %s30 = sshll.u32 [#allocation6], 4
      %s31 = int_to_ptr.vmem [resolvable:$true] %s30
      %36 = dma.hbm_to_vmem [thread:$0]  %s0, 256, %s31, [#allocation7], 128, 128, 8
    $region5: #{tpu_custom_call.1} parent=1 // pred_fallthru
      _
    // Predicated region
    $region6: #{tpu_custom_call.1} parent=1 // pred_check
      _
    $region7: #{tpu_custom_call.1} parent=1 // pred_check_branch
      %38 = sbr.rel (0) target = $region9
    $region8: #{tpu_custom_call.1} parent=1 // pred_region
      %s40 = ssub.s32 512, 512
      %41 = vsyncadd [#allocation10], %s40
      %s42 = sshll.u32 [#allocation9], 4
      %s43 = int_to_ptr.vmem [resolvable:$true] %s42
      %48 = dma.hbm_to_vmem [thread:$0]  %s1, 512, %s43, [#allocation10], 128, 128, 8
    $region9: #{tpu_custom_call.1} parent=1 // pred_fallthru
      _
    // Predicated region
    $region10: #{tpu_custom_call.1} parent=1 // pred_check
      _
    $region11: #{tpu_custom_call.1} parent=1 // pred_check_branch
      %50 = sbr.rel (0) target = $region13
    $region12: #{tpu_custom_call.1} parent=1 // pred_region
      %s52 = ssub.s32 512, 512
      %53 = vsyncadd [#allocation10], %s52
      %s54 = sshll.u32 [#allocation11], 4
      %s55 = int_to_ptr.vmem [resolvable:$true] %s54
      %60 = dma.hbm_to_vmem [thread:$0]  %s2, 512, %s55, [#allocation10], 128, 128, 8
    $region13: #{tpu_custom_call.1} parent=1 // pred_fallthru
      _
    // Predicated region
    $region14: #{tpu_custom_call.1} parent=1 // pred_check
      _
    $region15: #{tpu_custom_call.1} parent=1 // pred_check_branch
      %62 = sbr.rel (0) target = $region17
    $region16: #{tpu_custom_call.1} parent=1 // pred_region
      _
    $region17: #{tpu_custom_call.1} parent=1 // pred_fallthru
      _
    // Predicated region
    $region18: #{tpu_custom_call.1} parent=1 // pred_check
      _
    $region19: #{tpu_custom_call.1} parent=1 // pred_check_branch
      %64 = sbr.rel (0) target = $region21
    $region20: #{tpu_custom_call.1} parent=1 // pred_region
      %s66 = ssub.s32 512, 512
      %67 = vsyncadd [#allocation13], %s66
      %s68 = sshll.u32 [#allocation12], 4
      %s69 = int_to_ptr.vmem [resolvable:$true] %s68
      %74 = dma.hbm_to_vmem [thread:$0]  %s4, 512, %s69, [#allocation13], 128, 128, 8
    $region21: #{tpu_custom_call.1} parent=1 // pred_fallthru
      _
    // Predicated region
    $region22: #{tpu_custom_call.1} parent=1 // pred_check
      _
    $region23: #{tpu_custom_call.1} parent=1 // pred_check_branch
      %76 = sbr.rel (0) target = $region25
    $region24: #{tpu_custom_call.1} parent=1 // pred_region
      %s78 = ssub.s32 512, 512
      %79 = vsyncadd [#allocation13], %s78
      %s80 = sshll.u32 [#allocation14], 4
      %s81 = int_to_ptr.vmem [resolvable:$true] %s80
      %86 = dma.hbm_to_vmem [thread:$0]  %s5, 512, %s81, [#allocation13], 128, 128, 8
    $region25: #{tpu_custom_call.1} parent=1 // pred_fallthru
      _
    // Predicated region
    $region26: #{tpu_custom_call.1} parent=1 // pred_check
      _
    $region27: #{tpu_custom_call.1} parent=1 // pred_check_branch
      %88 = sbr.rel (0) target = $region29
    $region28: #{tpu_custom_call.1} parent=1 // pred_region
      _
    $region29: #{tpu_custom_call.1} parent=1 // pred_fallthru
      _
    // Predicated region
    $region30: #{tpu_custom_call.1} parent=1 // pred_check
      _
    $region31: #{tpu_custom_call.1} parent=1 // pred_check_branch
      %90 = sbr.rel (0) target = $region33
    $region32: #{tpu_custom_call.1} parent=1 // pred_region
      %s92 = ssub.s32 512, 512
      %93 = vsyncadd [#allocation16], %s92
      %s94 = sshll.u32 [#allocation15], 4
      %s95 = int_to_ptr.vmem [resolvable:$true] %s94
      %100 = dma.hbm_to_vmem [thread:$0]  %s7, 512, %s95, [#allocation16], 128, 128, 8
    $region33: #{tpu_custom_call.1} parent=1 // pred_fallthru
      _
    // Predicated region
    $region34: #{tpu_custom_call.1} parent=1 // pred_check
      _
    $region35: #{tpu_custom_call.1} parent=1 // pred_check_branch
      %102 = sbr.rel (0) target = $region37
    $region36: #{tpu_custom_call.1} parent=1 // pred_region
      _
    $region37: #{tpu_custom_call.1} parent=1 // pred_fallthru
      _
    // Predicated region
    $region38: #{tpu_custom_call.1} parent=1 // pred_check
      _
    $region39: #{tpu_custom_call.1} parent=1 // pred_check_branch
      %104 = sbr.rel (0) target = $region41
    $region40: #{tpu_custom_call.1} parent=1 // pred_region
      _
    $region41: #{tpu_custom_call.1} parent=1 // pred_fallthru
      _
    // Predicated region
    $region42: #{tpu_custom_call.1} parent=1 // pred_check
      _
    $region43: #{tpu_custom_call.1} parent=1 // pred_check_branch
      %106 = sbr.rel (0) target = $region45
    $region44: #{tpu_custom_call.1} parent=1 // pred_region
      _
    $region45: #{tpu_custom_call.1} parent=1 // pred_fallthru
      _
    // Predicated region
    $region46: #{tpu_custom_call.1} parent=1 // pred_check
      _
    $region47: #{tpu_custom_call.1} parent=1 // pred_check_branch
      %108 = sbr.rel (0) target = $region49
    $region48: #{tpu_custom_call.1} parent=1 // pred_region
      %109 = dma.done [#allocation7], 256
    $region49: #{tpu_custom_call.1} parent=1 // pred_fallthru
      _
    // Predicated region
    $region50: #{tpu_custom_call.1} parent=1 // pred_check
      _
    $region51: #{tpu_custom_call.1} parent=1 // pred_check_branch
      %111 = sbr.rel (0) target = $region53
    $region52: #{tpu_custom_call.1} parent=1 // pred_region
      %112 = dma.done [#allocation10], 512
    $region53: #{tpu_custom_call.1} parent=1 // pred_fallthru
      _
    // Predicated region
    $region54: #{tpu_custom_call.1} parent=1 // pred_check
      _
    $region55: #{tpu_custom_call.1} parent=1 // pred_check_branch
      %114 = sbr.rel (0) target = $region57
    $region56: #{tpu_custom_call.1} parent=1 // pred_region
      %115 = dma.done [#allocation10], 512
    $region57: #{tpu_custom_call.1} parent=1 // pred_fallthru
      _
    // Predicated region
    $region58: #{tpu_custom_call.1} parent=1 // pred_check
      _
    $region59: #{tpu_custom_call.1} parent=1 // pred_check_branch
      %117 = sbr.rel (0) target = $region61
    $region60: #{tpu_custom_call.1} parent=1 // pred_region
      %118 = dma.done [#allocation13], 512
    $region61: #{tpu_custom_call.1} parent=1 // pred_fallthru
      _
    // Predicated region
    $region62: #{tpu_custom_call.1} parent=1 // pred_check
      _
    $region63: #{tpu_custom_call.1} parent=1 // pred_check_branch
      %120 = sbr.rel (0) target = $region65
    $region64: #{tpu_custom_call.1} parent=1 // pred_region
      %121 = dma.done [#allocation13], 512
    $region65: #{tpu_custom_call.1} parent=1 // pred_fallthru
      _
    // Predicated region
    $region66: #{tpu_custom_call.1} parent=1 // pred_check
      _
    $region67: #{tpu_custom_call.1} parent=1 // pred_check_branch
      %123 = sbr.rel (0) target = $region69
    $region68: #{tpu_custom_call.1} parent=1 // pred_region
      %124 = dma.done [#allocation16], 512
    $region69: #{tpu_custom_call.1} parent=1 // pred_fallthru
      _
    %v125 = vld [vmem:[#allocation6] sm:$0xff]
    %v126 = vld [vmem:[#allocation6 + $0x8] sm:$0xff]
    %v127 = vld [vmem:[#allocation9] sm:$0xff]
    %v128 = vld [vmem:[#allocation9 + $0x8] sm:$0xff]
    %v129 = vld [vmem:[#allocation9 + $0x10] sm:$0xff]
    %v130 = vld [vmem:[#allocation9 + $0x18] sm:$0xff]
    %v131 = vld [vmem:[%s3] sm:$0x1]
    %v133 = vlaneseq
    %v134 = vshrl.u32 %v133, 7
    %v135 = vsub.s32 0, %v134
    %v136 = vrot.slane %v131, %v135
    %vm138 = vcmask 261120
    %v140 = vsel %vm138, %v125, 0
    %v143 = vsel %vm138, %v126, 0
    %145 = vmatprep.subr.mxu0 0.0
    %146 = vmatpush1.msra.mxu0 0.0
    %147 = vmatprep.subr.mxu0 0.0
    %148 = vmatpush1.msra.mxu0 0.0
    %149 = vmatprep.subr.mxu0 0.0
    %150 = vmatpush1.msra.mxu0 0.0
    %151 = vmatprep.subr.mxu0 0.0
    %152 = vmatpush1.msra.mxu0 0.0
    %153 = vmatprep.subr.mxu0 0.0
    %154 = vmatpush1.msra.mxu0 0.0
    %155 = vmatprep.subr.mxu0 0.0
    %156 = vmatpush1.msra.mxu0 0.0
    %157 = vmatprep.subr.mxu0 0.0
    %158 = vmatpush1.msra.mxu0 0.0
    %159 = vmatprep.subr.mxu0 0.0
    %160 = vmatpush1.msra.mxu0 0.0
    %161 = vmatprep.subr.mxu0 0.0
    %162 = vmatpush1.msra.mxu0 0.0
    %163 = vmatprep.subr.mxu0 0.0
    %164 = vmatpush1.msra.mxu0 0.0
    %165 = vmatprep.subr.mxu0 0.0
    %166 = vmatpush1.msra.mxu0 0.0
    %167 = vmatprep.subr.mxu0 0.0
    %168 = vmatpush1.msra.mxu0 0.0
    %169 = vmatprep.subr.mxu0 0.0
    %170 = vmatpush1.msra.mxu0 %v130
    %171 = vmatprep.subr.mxu0 0.0
    %172 = vmatpush1.msra.mxu0 %v129
    %173 = vmatprep.subr.mxu0 0.0
    %174 = vmatpush1.msra.mxu0 %v128
    %175 = vmatprep.subr.mxu0 0.0
    %176 = vmatpush1.msra.mxu0 %v127
    %177 = vmatprep.subr.mxu0 0.0
    %178 = vmatpush2.msra.mxu0 0.0
    %179 = vmatprep.subr.mxu0 0.0
    %180 = vmatpush2.msra.mxu0 0.0
    %181 = vmatprep.subr.mxu0 0.0
    %182 = vmatpush2.msra.mxu0 0.0
    %183 = vmatprep.subr.mxu0 0.0
    %184 = vmatpush2.msra.mxu0 0.0
    %185 = vmatprep.subr.mxu0 0.0
    %186 = vmatpush2.msra.mxu0 0.0
    %187 = vmatprep.subr.mxu0 0.0
    %188 = vmatpush2.msra.mxu0 0.0
    %189 = vmatprep.subr.mxu0 0.0
    %190 = vmatpush2.msra.mxu0 0.0
    %191 = vmatprep.subr.mxu0 0.0
    %192 = vmatpush2.msra.mxu0 0.0
    %193 = vmatprep.subr.mxu0 0.0
    %194 = vmatpush2.msra.mxu0 0.0
    %195 = vmatprep.subr.mxu0 0.0
    %196 = vmatpush2.msra.mxu0 0.0
    %197 = vmatprep.subr.mxu0 0.0
    %198 = vmatpush2.msra.mxu0 0.0
    %199 = vmatprep.subr.mxu0 0.0
    %200 = vmatpush2.msra.mxu0 0.0
    %201 = vmatprep.subr.mxu0 0.0
    %202 = vmatpush2.msra.mxu0 0.0
    %203 = vmatprep.subr.mxu0 0.0
    %204 = vmatpush2.msra.mxu0 0.0
    %205 = vmatprep.subr.mxu0 0.0
    %206 = vmatpush2.msra.mxu0 0.0
    %207 = vmatprep.subr.mxu0 0.0
    %208 = vmatpush2.msra.mxu0 0.0
    %209 = vmatprep.mubr.f32.mxu0 0.0
    %210 = vmatmul.mubr.f32.gmra.mxu0 %v140
    %v211 = vpop.f32.mrf.mxu0
    %v212 = vadd.f32 %v136, %v211
    %v213 = vpop.f32.mrf.mxu0
    %214 = vmatprep.mubr.f32.mxu0 0.0
    %215 = vmatmul.mubr.f32.gmra.mxu0 %v143
    %v216 = vpop.f32.mrf.mxu0
    %v217 = vadd.f32 %v136, %v216
    %v218 = vpop.f32.mrf.mxu0
    %219 = vdwg.mxu0
    %220 = vst [vmem:[#allocation2] sm:$0xff] %v212
    %221 = vst [vmem:[#allocation2 + $0x8] sm:$0xff] %v217
    %v222 = vld [vmem:[#allocation11] sm:$0xff]
    %v223 = vld [vmem:[#allocation11 + $0x8] sm:$0xff]
    %v224 = vld [vmem:[#allocation11 + $0x10] sm:$0xff]
    %v225 = vld [vmem:[#allocation11 + $0x18] sm:$0xff]
    %v226 = vld [vmem:[%s9] sm:$0x3]
    %v227 = vld [vmem:[%s10] sm:$0x3]
    %v228 = vld [vmem:[#allocation2] sm:$0x3]
    %v230 = vsel %vm138, %v226, 0
    %232 = vmatprep.subr.mxu0 0.0
    %233 = vmatpush1.msra.mxu0 0.0
    %234 = vmatprep.subr.mxu0 0.0
    %235 = vmatpush1.msra.mxu0 0.0
    %236 = vmatprep.subr.mxu0 0.0
    %237 = vmatpush1.msra.mxu0 0.0
    %238 = vmatprep.subr.mxu0 0.0
    %239 = vmatpush1.msra.mxu0 0.0
    %240 = vmatprep.subr.mxu0 0.0
    %241 = vmatpush1.msra.mxu0 0.0
    %242 = vmatprep.subr.mxu0 0.0
    %243 = vmatpush1.msra.mxu0 0.0
    %244 = vmatprep.subr.mxu0 0.0
    %245 = vmatpush1.msra.mxu0 0.0
    %246 = vmatprep.subr.mxu0 0.0
    %247 = vmatpush1.msra.mxu0 0.0
    %248 = vmatprep.subr.mxu0 0.0
    %249 = vmatpush1.msra.mxu0 0.0
    %250 = vmatprep.subr.mxu0 0.0
    %251 = vmatpush1.msra.mxu0 0.0
    %252 = vmatprep.subr.mxu0 0.0
    %253 = vmatpush1.msra.mxu0 0.0
    %254 = vmatprep.subr.mxu0 0.0
    %255 = vmatpush1.msra.mxu0 0.0
    %256 = vmatprep.subr.mxu0 0.0
    %257 = vmatpush1.msra.mxu0 %v225
    %258 = vmatprep.subr.mxu0 0.0
    %259 = vmatpush1.msra.mxu0 %v224
    %260 = vmatprep.subr.mxu0 0.0
    %261 = vmatpush1.msra.mxu0 %v223
    %262 = vmatprep.subr.mxu0 0.0
    %263 = vmatpush1.msra.mxu0 %v222
    %264 = vmatprep.subr.mxu0 0.0
    %265 = vmatpush2.msra.mxu0 0.0
    %266 = vmatprep.subr.mxu0 0.0
    %267 = vmatpush2.msra.mxu0 0.0
    %268 = vmatprep.subr.mxu0 0.0
    %269 = vmatpush2.msra.mxu0 0.0
    %270 = vmatprep.subr.mxu0 0.0
    %271 = vmatpush2.msra.mxu0 0.0
    %272 = vmatprep.subr.mxu0 0.0
    %273 = vmatpush2.msra.mxu0 0.0
    %274 = vmatprep.subr.mxu0 0.0
    %275 = vmatpush2.msra.mxu0 0.0
    %276 = vmatprep.subr.mxu0 0.0
    %277 = vmatpush2.msra.mxu0 0.0
    %278 = vmatprep.subr.mxu0 0.0
    %279 = vmatpush2.msra.mxu0 0.0
    %280 = vmatprep.subr.mxu0 0.0
    %281 = vmatpush2.msra.mxu0 0.0
    %282 = vmatprep.subr.mxu0 0.0
    %283 = vmatpush2.msra.mxu0 0.0
    %284 = vmatprep.subr.mxu0 0.0
    %285 = vmatpush2.msra.mxu0 0.0
    %286 = vmatprep.subr.mxu0 0.0
    %287 = vmatpush2.msra.mxu0 0.0
    %288 = vmatprep.subr.mxu0 0.0
    %289 = vmatpush2.msra.mxu0 0.0
    %290 = vmatprep.subr.mxu0 0.0
    %291 = vmatpush2.msra.mxu0 0.0
    %292 = vmatprep.subr.mxu0 0.0
    %293 = vmatpush2.msra.mxu0 0.0
    %294 = vmatprep.subr.mxu0 0.0
    %295 = vmatpush2.msra.mxu0 0.0
    %296 = vmatprep.mubr.f32.mxu0 0.0
    %297 = vmatmul.mubr.f32.gmra.mxu0 %v230
    %v298 = vpop.f32.mrf.mxu0
    %v299 = vadd.f32 %v228, %v298
    %v300 = vpop.f32.mrf.mxu0
    %301 = vdwg.mxu0
    %v302 = vxor.u32 %v299, 2147483648
    %v303 = vmul.f32 %v302, 1.442695
    %v304 = vpow.pop %v303
    %v305 = vadd.f32 %v304, 1.0
    %v306 = vrcp.pop %v305
    %v307 = vmul.f32 1.0, %v306
    %v308 = vtanh.pop %v299
    %310 = vrot.lane.b32.xlu0 %v227, 32
    %v311 = vpop.permute.xlu0 %310
    %v313 = vmul.f32 %v307, %v311
    %315 = vrot.lane.b32.xlu0 %v308, 64
    %v316 = vpop.permute.xlu0 %315
    %v318 = vmul.f32 %v307, %v316
    %320 = vrot.lane.b32.xlu0 %v318, 32
    %v321 = vpop.permute.xlu0 %320
    %v323 = vadd.f32 %v313, %v321
    %v324 = vtanh.pop %v323
    %326 = vrot.lane.b32.xlu0 %v324, 64
    %v327 = vpop.permute.xlu0 %326
    %v329 = vmul.f32 %v307, %v327
    %331 = vrot.lane.b32.xlu0 %v329, 32
    %v332 = vpop.permute.xlu0 %331
    %vm334 = vcmask 254976
    %335 = vst.msk [vmem:[#allocation4] sm:$0x3] %vm334, %v332
    %v336 = vld [vmem:[#allocation2 + $0x2] sm:$0x3]
    %v337 = vsel %vm138, %v332, 0
    %339 = vmatprep.subr.mxu0 0.0
    %340 = vmatpush1.msra.mxu0 0.0
    %341 = vmatprep.subr.mxu0 0.0
    %342 = vmatpush1.msra.mxu0 0.0
    %343 = vmatprep.subr.mxu0 0.0
    %344 = vmatpush1.msra.mxu0 0.0
    %345 = vmatprep.subr.mxu0 0.0
    %346 = vmatpush1.msra.mxu0 0.0
    %347 = vmatprep.subr.mxu0 0.0
    %348 = vmatpush1.msra.mxu0 0.0
    %349 = vmatprep.subr.mxu0 0.0
    %350 = vmatpush1.msra.mxu0 0.0
    %351 = vmatprep.subr.mxu0 0.0
    %352 = vmatpush1.msra.mxu0 0.0
    %353 = vmatprep.subr.mxu0 0.0
    %354 = vmatpush1.msra.mxu0 0.0
    %355 = vmatprep.subr.mxu0 0.0
    %356 = vmatpush1.msra.mxu0 0.0
    %357 = vmatprep.subr.mxu0 0.0
    %358 = vmatpush1.msra.mxu0 0.0
    %359 = vmatprep.subr.mxu0 0.0
    %360 = vmatpush1.msra.mxu0 0.0
    %361 = vmatprep.subr.mxu0 0.0
    %362 = vmatpush1.msra.mxu0 0.0
    %363 = vmatprep.subr.mxu0 0.0
    %364 = vmatpush1.msra.mxu0 %v225
    %365 = vmatprep.subr.mxu0 0.0
    %366 = vmatpush1.msra.mxu0 %v224
    %367 = vmatprep.subr.mxu0 0.0
    %368 = vmatpush1.msra.mxu0 %v223
    %369 = vmatprep.subr.mxu0 0.0
    %370 = vmatpush1.msra.mxu0 %v222
    %371 = vmatprep.subr.mxu0 0.0
    %372 = vmatpush2.msra.mxu0 0.0
    %373 = vmatprep.subr.mxu0 0.0
    %374 = vmatpush2.msra.mxu0 0.0
    %375 = vmatprep.subr.mxu0 0.0
    %376 = vmatpush2.msra.mxu0 0.0
    %377 = vmatprep.subr.mxu0 0.0
    %378 = vmatpush2.msra.mxu0 0.0
    %379 = vmatprep.subr.mxu0 0.0
    %380 = vmatpush2.msra.mxu0 0.0
    %381 = vmatprep.subr.mxu0 0.0
    %382 = vmatpush2.msra.mxu0 0.0
    %383 = vmatprep.subr.mxu0 0.0
    %384 = vmatpush2.msra.mxu0 0.0
    %385 = vmatprep.subr.mxu0 0.0
    %386 = vmatpush2.msra.mxu0 0.0
    %387 = vmatprep.subr.mxu0 0.0
    %388 = vmatpush2.msra.mxu0 0.0
    %389 = vmatprep.subr.mxu0 0.0
    %390 = vmatpush2.msra.mxu0 0.0
    %391 = vmatprep.subr.mxu0 0.0
    %392 = vmatpush2.msra.mxu0 0.0
    %393 = vmatprep.subr.mxu0 0.0
    %394 = vmatpush2.msra.mxu0 0.0
    %395 = vmatprep.subr.mxu0 0.0
    %396 = vmatpush2.msra.mxu0 0.0
    %397 = vmatprep.subr.mxu0 0.0
    %398 = vmatpush2.msra.mxu0 0.0
    %399 = vmatprep.subr.mxu0 0.0
    %400 = vmatpush2.msra.mxu0 0.0
    %401 = vmatprep.subr.mxu0 0.0
    %402 = vmatpush2.msra.mxu0 0.0
    %403 = vmatprep.mubr.f32.mxu0 0.0
    %404 = vmatmul.mubr.f32.gmra.mxu0 %v337
    %v405 = vpop.f32.mrf.mxu0
    %v406 = vadd.f32 %v336, %v405
    %v407 = vpop.f32.mrf.mxu0
    %408 = vdwg.mxu0
    %v409 = vxor.u32 %v406, 2147483648
    %v410 = vmul.f32 %v409, 1.442695
    %v411 = vpow.pop %v410
    %v412 = vadd.f32 %v411, 1.0
    %v413 = vrcp.pop %v412
    %v414 = vmul.f32 1.0, %v413
    %v415 = vtanh.pop %v406
    %v416 = vmul.f32 %v414, %v323
    %418 = vrot.lane.b32.xlu0 %v415, 64
    %v419 = vpop.permute.xlu0 %418
    %v421 = vmul.f32 %v414, %v419
    %423 = vrot.lane.b32.xlu0 %v421, 32
    %v424 = vpop.permute.xlu0 %423
    %v426 = vadd.f32 %v416, %v424
    %v427 = vtanh.pop %v426
    %429 = vrot.lane.b32.xlu0 %v427, 64
    %v430 = vpop.permute.xlu0 %429
    %v432 = vmul.f32 %v414, %v430
    %434 = vrot.lane.b32.xlu0 %v432, 32
    %v435 = vpop.permute.xlu0 %434
    %437 = vst.msk [vmem:[#allocation4 + $0x2] sm:$0x3] %vm334, %v435
    %v438 = vld [vmem:[#allocation2 + $0x4] sm:$0x3]
    %v439 = vsel %vm138, %v435, 0
    %441 = vmatprep.subr.mxu0 0.0
    %442 = vmatpush1.msra.mxu0 0.0
    %443 = vmatprep.subr.mxu0 0.0
    %444 = vmatpush1.msra.mxu0 0.0
    %445 = vmatprep.subr.mxu0 0.0
    %446 = vmatpush1.msra.mxu0 0.0
    %447 = vmatprep.subr.mxu0 0.0
    %448 = vmatpush1.msra.mxu0 0.0
    %449 = vmatprep.subr.mxu0 0.0
    %450 = vmatpush1.msra.mxu0 0.0
    %451 = vmatprep.subr.mxu0 0.0
    %452 = vmatpush1.msra.mxu0 0.0
    %453 = vmatprep.subr.mxu0 0.0
    %454 = vmatpush1.msra.mxu0 0.0
    %455 = vmatprep.subr.mxu0 0.0
    %456 = vmatpush1.msra.mxu0 0.0
    %457 = vmatprep.subr.mxu0 0.0
    %458 = vmatpush1.msra.mxu0 0.0
    %459 = vmatprep.subr.mxu0 0.0
    %460 = vmatpush1.msra.mxu0 0.0
    %461 = vmatprep.subr.mxu0 0.0
    %462 = vmatpush1.msra.mxu0 0.0
    %463 = vmatprep.subr.mxu0 0.0
    %464 = vmatpush1.msra.mxu0 0.0
    %465 = vmatprep.subr.mxu0 0.0
    %466 = vmatpush1.msra.mxu0 %v225
    %467 = vmatprep.subr.mxu0 0.0
    %468 = vmatpush1.msra.mxu0 %v224
    %469 = vmatprep.subr.mxu0 0.0
    %470 = vmatpush1.msra.mxu0 %v223
    %471 = vmatprep.subr.mxu0 0.0
    %472 = vmatpush1.msra.mxu0 %v222
    %473 = vmatprep.subr.mxu0 0.0
    %474 = vmatpush2.msra.mxu0 0.0
    %475 = vmatprep.subr.mxu0 0.0
    %476 = vmatpush2.msra.mxu0 0.0
    %477 = vmatprep.subr.mxu0 0.0
    %478 = vmatpush2.msra.mxu0 0.0
    %479 = vmatprep.subr.mxu0 0.0
    %480 = vmatpush2.msra.mxu0 0.0
    %481 = vmatprep.subr.mxu0 0.0
    %482 = vmatpush2.msra.mxu0 0.0
    %483 = vmatprep.subr.mxu0 0.0
    %484 = vmatpush2.msra.mxu0 0.0
    %485 = vmatprep.subr.mxu0 0.0
    %486 = vmatpush2.msra.mxu0 0.0
    %487 = vmatprep.subr.mxu0 0.0
    %488 = vmatpush2.msra.mxu0 0.0
    %489 = vmatprep.subr.mxu0 0.0
    %490 = vmatpush2.msra.mxu0 0.0
    %491 = vmatprep.subr.mxu0 0.0
    %492 = vmatpush2.msra.mxu0 0.0
    %493 = vmatprep.subr.mxu0 0.0
    %494 = vmatpush2.msra.mxu0 0.0
    %495 = vmatprep.subr.mxu0 0.0
    %496 = vmatpush2.msra.mxu0 0.0
    %497 = vmatprep.subr.mxu0 0.0
    %498 = vmatpush2.msra.mxu0 0.0
    %499 = vmatprep.subr.mxu0 0.0
    %500 = vmatpush2.msra.mxu0 0.0
    %501 = vmatprep.subr.mxu0 0.0
    %502 = vmatpush2.msra.mxu0 0.0
    %503 = vmatprep.subr.mxu0 0.0
    %504 = vmatpush2.msra.mxu0 0.0
    %505 = vmatprep.mubr.f32.mxu0 0.0
    %506 = vmatmul.mubr.f32.gmra.mxu0 %v439
    %v507 = vpop.f32.mrf.mxu0
    %v508 = vadd.f32 %v438, %v507
    %v509 = vpop.f32.mrf.mxu0
    %510 = vdwg.mxu0
    %v511 = vxor.u32 %v508, 2147483648
    %v512 = vmul.f32 %v511, 1.442695
    %v513 = vpow.pop %v512
    %v514 = vadd.f32 %v513, 1.0
    %v515 = vrcp.pop %v514
    %v516 = vmul.f32 1.0, %v515
    %v517 = vtanh.pop %v508
    %v518 = vmul.f32 %v516, %v426
    %520 = vrot.lane.b32.xlu0 %v517, 64
    %v521 = vpop.permute.xlu0 %520
    %v523 = vmul.f32 %v516, %v521
    %525 = vrot.lane.b32.xlu0 %v523, 32
    %v526 = vpop.permute.xlu0 %525
    %v528 = vadd.f32 %v518, %v526
    %v529 = vtanh.pop %v528
    %531 = vrot.lane.b32.xlu0 %v529, 64
    %v532 = vpop.permute.xlu0 %531
    %v534 = vmul.f32 %v516, %v532
    %536 = vrot.lane.b32.xlu0 %v534, 32
    %v537 = vpop.permute.xlu0 %536
    %539 = vst.msk [vmem:[#allocation4 + $0x4] sm:$0x3] %vm334, %v537
    %v540 = vld [vmem:[#allocation2 + $0x6] sm:$0x3]
    %v541 = vsel %vm138, %v537, 0
    %543 = vmatprep.subr.mxu0 0.0
    %544 = vmatpush1.msra.mxu0 0.0
    %545 = vmatprep.subr.mxu0 0.0
    %546 = vmatpush1.msra.mxu0 0.0
    %547 = vmatprep.subr.mxu0 0.0
    %548 = vmatpush1.msra.mxu0 0.0
    %549 = vmatprep.subr.mxu0 0.0
    %550 = vmatpush1.msra.mxu0 0.0
    %551 = vmatprep.subr.mxu0 0.0
    %552 = vmatpush1.msra.mxu0 0.0
    %553 = vmatprep.subr.mxu0 0.0
    %554 = vmatpush1.msra.mxu0 0.0
    %555 = vmatprep.subr.mxu0 0.0
    %556 = vmatpush1.msra.mxu0 0.0
    %557 = vmatprep.subr.mxu0 0.0
    %558 = vmatpush1.msra.mxu0 0.0
    %559 = vmatprep.subr.mxu0 0.0
    %560 = vmatpush1.msra.mxu0 0.0
    %561 = vmatprep.subr.mxu0 0.0
    %562 = vmatpush1.msra.mxu0 0.0
    %563 = vmatprep.subr.mxu0 0.0
    %564 = vmatpush1.msra.mxu0 0.0
    %565 = vmatprep.subr.mxu0 0.0
    %566 = vmatpush1.msra.mxu0 0.0
    %567 = vmatprep.subr.mxu0 0.0
    %568 = vmatpush1.msra.mxu0 %v225
    %569 = vmatprep.subr.mxu0 0.0
    %570 = vmatpush1.msra.mxu0 %v224
    %571 = vmatprep.subr.mxu0 0.0
    %572 = vmatpush1.msra.mxu0 %v223
    %573 = vmatprep.subr.mxu0 0.0
    %574 = vmatpush1.msra.mxu0 %v222
    %575 = vmatprep.subr.mxu0 0.0
    %576 = vmatpush2.msra.mxu0 0.0
    %577 = vmatprep.subr.mxu0 0.0
    %578 = vmatpush2.msra.mxu0 0.0
    %579 = vmatprep.subr.mxu0 0.0
    %580 = vmatpush2.msra.mxu0 0.0
    %581 = vmatprep.subr.mxu0 0.0
    %582 = vmatpush2.msra.mxu0 0.0
    %583 = vmatprep.subr.mxu0 0.0
    %584 = vmatpush2.msra.mxu0 0.0
    %585 = vmatprep.subr.mxu0 0.0
    %586 = vmatpush2.msra.mxu0 0.0
    %587 = vmatprep.subr.mxu0 0.0
    %588 = vmatpush2.msra.mxu0 0.0
    %589 = vmatprep.subr.mxu0 0.0
    %590 = vmatpush2.msra.mxu0 0.0
    %591 = vmatprep.subr.mxu0 0.0
    %592 = vmatpush2.msra.mxu0 0.0
    %593 = vmatprep.subr.mxu0 0.0
    %594 = vmatpush2.msra.mxu0 0.0
    %595 = vmatprep.subr.mxu0 0.0
    %596 = vmatpush2.msra.mxu0 0.0
    %597 = vmatprep.subr.mxu0 0.0
    %598 = vmatpush2.msra.mxu0 0.0
    %599 = vmatprep.subr.mxu0 0.0
    %600 = vmatpush2.msra.mxu0 0.0
    %601 = vmatprep.subr.mxu0 0.0
    %602 = vmatpush2.msra.mxu0 0.0
    %603 = vmatprep.subr.mxu0 0.0
    %604 = vmatpush2.msra.mxu0 0.0
    %605 = vmatprep.subr.mxu0 0.0
    %606 = vmatpush2.msra.mxu0 0.0
    %607 = vmatprep.mubr.f32.mxu0 0.0
    %608 = vmatmul.mubr.f32.gmra.mxu0 %v541
    %v609 = vpop.f32.mrf.mxu0
    %v610 = vadd.f32 %v540, %v609
    %v611 = vpop.f32.mrf.mxu0
    %612 = vdwg.mxu0
    %v613 = vxor.u32 %v610, 2147483648
    %v614 = vmul.f32 %v613, 1.442695
    %v615 = vpow.pop %v614
    %v616 = vadd.f32 %v615, 1.0
    %v617 = vrcp.pop %v616
    %v618 = vmul.f32 1.0, %v617
    %v619 = vtanh.pop %v610
    %v620 = vmul.f32 %v618, %v528
    %622 = vrot.lane.b32.xlu0 %v619, 64
    %v623 = vpop.permute.xlu0 %622
    %v625 = vmul.f32 %v618, %v623
    %627 = vrot.lane.b32.xlu0 %v625, 32
    %v628 = vpop.permute.xlu0 %627
    %v630 = vadd.f32 %v620, %v628
    %v631 = vtanh.pop %v630
    %633 = vrot.lane.b32.xlu0 %v631, 64
    %v634 = vpop.permute.xlu0 %633
    %v636 = vmul.f32 %v618, %v634
    %638 = vrot.lane.b32.xlu0 %v636, 32
    %v639 = vpop.permute.xlu0 %638
    %641 = vst.msk [vmem:[#allocation4 + $0x6] sm:$0x3] %vm334, %v639
    %v642 = vld [vmem:[#allocation2 + $0x8] sm:$0x3]
    %v643 = vsel %vm138, %v639, 0
    %645 = vmatprep.subr.mxu0 0.0
    %646 = vmatpush1.msra.mxu0 0.0
    %647 = vmatprep.subr.mxu0 0.0
    %648 = vmatpush1.msra.mxu0 0.0
    %649 = vmatprep.subr.mxu0 0.0
    %650 = vmatpush1.msra.mxu0 0.0
    %651 = vmatprep.subr.mxu0 0.0
    %652 = vmatpush1.msra.mxu0 0.0
    %653 = vmatprep.subr.mxu0 0.0
    %654 = vmatpush1.msra.mxu0 0.0
    %655 = vmatprep.subr.mxu0 0.0
    %656 = vmatpush1.msra.mxu0 0.0
    %657 = vmatprep.subr.mxu0 0.0
    %658 = vmatpush1.msra.mxu0 0.0
    %659 = vmatprep.subr.mxu0 0.0
    %660 = vmatpush1.msra.mxu0 0.0
    %661 = vmatprep.subr.mxu0 0.0
    %662 = vmatpush1.msra.mxu0 0.0
    %663 = vmatprep.subr.mxu0 0.0
    %664 = vmatpush1.msra.mxu0 0.0
    %665 = vmatprep.subr.mxu0 0.0
    %666 = vmatpush1.msra.mxu0 0.0
    %667 = vmatprep.subr.mxu0 0.0
    %668 = vmatpush1.msra.mxu0 0.0
    %669 = vmatprep.subr.mxu0 0.0
    %670 = vmatpush1.msra.mxu0 %v225
    %671 = vmatprep.subr.mxu0 0.0
    %672 = vmatpush1.msra.mxu0 %v224
    %673 = vmatprep.subr.mxu0 0.0
    %674 = vmatpush1.msra.mxu0 %v223
    %675 = vmatprep.subr.mxu0 0.0
    %676 = vmatpush1.msra.mxu0 %v222
    %677 = vmatprep.subr.mxu0 0.0
    %678 = vmatpush2.msra.mxu0 0.0
    %679 = vmatprep.subr.mxu0 0.0
    %680 = vmatpush2.msra.mxu0 0.0
    %681 = vmatprep.subr.mxu0 0.0
    %682 = vmatpush2.msra.mxu0 0.0
    %683 = vmatprep.subr.mxu0 0.0
    %684 = vmatpush2.msra.mxu0 0.0
    %685 = vmatprep.subr.mxu0 0.0
    %686 = vmatpush2.msra.mxu0 0.0
    %687 = vmatprep.subr.mxu0 0.0
    %688 = vmatpush2.msra.mxu0 0.0
    %689 = vmatprep.subr.mxu0 0.0
    %690 = vmatpush2.msra.mxu0 0.0
    %691 = vmatprep.subr.mxu0 0.0
    %692 = vmatpush2.msra.mxu0 0.0
    %693 = vmatprep.subr.mxu0 0.0
    %694 = vmatpush2.msra.mxu0 0.0
    %695 = vmatprep.subr.mxu0 0.0
    %696 = vmatpush2.msra.mxu0 0.0
    %697 = vmatprep.subr.mxu0 0.0
    %698 = vmatpush2.msra.mxu0 0.0
    %699 = vmatprep.subr.mxu0 0.0
    %700 = vmatpush2.msra.mxu0 0.0
    %701 = vmatprep.subr.mxu0 0.0
    %702 = vmatpush2.msra.mxu0 0.0
    %703 = vmatprep.subr.mxu0 0.0
    %704 = vmatpush2.msra.mxu0 0.0
    %705 = vmatprep.subr.mxu0 0.0
    %706 = vmatpush2.msra.mxu0 0.0
    %707 = vmatprep.subr.mxu0 0.0
    %708 = vmatpush2.msra.mxu0 0.0
    %709 = vmatprep.mubr.f32.mxu0 0.0
    %710 = vmatmul.mubr.f32.gmra.mxu0 %v643
    %v711 = vpop.f32.mrf.mxu0
    %v712 = vadd.f32 %v642, %v711
    %v713 = vpop.f32.mrf.mxu0
    %714 = vdwg.mxu0
    %v715 = vxor.u32 %v712, 2147483648
    %v716 = vmul.f32 %v715, 1.442695
    %v717 = vpow.pop %v716
    %v718 = vadd.f32 %v717, 1.0
    %v719 = vrcp.pop %v718
    %v720 = vmul.f32 1.0, %v719
    %v721 = vtanh.pop %v712
    %v722 = vmul.f32 %v720, %v630
    %724 = vrot.lane.b32.xlu0 %v721, 64
    %v725 = vpop.permute.xlu0 %724
    %v727 = vmul.f32 %v720, %v725
    %729 = vrot.lane.b32.xlu0 %v727, 32
    %v730 = vpop.permute.xlu0 %729
    %v732 = vadd.f32 %v722, %v730
    %v733 = vtanh.pop %v732
    %735 = vrot.lane.b32.xlu0 %v733, 64
    %v736 = vpop.permute.xlu0 %735
    %v738 = vmul.f32 %v720, %v736
    %740 = vrot.lane.b32.xlu0 %v738, 32
    %v741 = vpop.permute.xlu0 %740
    %743 = vst.msk [vmem:[#allocation4 + $0x8] sm:$0x3] %vm334, %v741
    %v744 = vld [vmem:[#allocation2 + $0xa] sm:$0x3]
    %v745 = vsel %vm138, %v741, 0
    %747 = vmatprep.subr.mxu0 0.0
    %748 = vmatpush1.msra.mxu0 0.0
    %749 = vmatprep.subr.mxu0 0.0
    %750 = vmatpush1.msra.mxu0 0.0
    %751 = vmatprep.subr.mxu0 0.0
    %752 = vmatpush1.msra.mxu0 0.0
    %753 = vmatprep.subr.mxu0 0.0
    %754 = vmatpush1.msra.mxu0 0.0
    %755 = vmatprep.subr.mxu0 0.0
    %756 = vmatpush1.msra.mxu0 0.0
    %757 = vmatprep.subr.mxu0 0.0
    %758 = vmatpush1.msra.mxu0 0.0
    %759 = vmatprep.subr.mxu0 0.0
    %760 = vmatpush1.msra.mxu0 0.0
    %761 = vmatprep.subr.mxu0 0.0
    %762 = vmatpush1.msra.mxu0 0.0
    %763 = vmatprep.subr.mxu0 0.0
    %764 = vmatpush1.msra.mxu0 0.0
    %765 = vmatprep.subr.mxu0 0.0
    %766 = vmatpush1.msra.mxu0 0.0
    %767 = vmatprep.subr.mxu0 0.0
    %768 = vmatpush1.msra.mxu0 0.0
    %769 = vmatprep.subr.mxu0 0.0
    %770 = vmatpush1.msra.mxu0 0.0
    %771 = vmatprep.subr.mxu0 0.0
    %772 = vmatpush1.msra.mxu0 %v225
    %773 = vmatprep.subr.mxu0 0.0
    %774 = vmatpush1.msra.mxu0 %v224
    %775 = vmatprep.subr.mxu0 0.0
    %776 = vmatpush1.msra.mxu0 %v223
    %777 = vmatprep.subr.mxu0 0.0
    %778 = vmatpush1.msra.mxu0 %v222
    %779 = vmatprep.subr.mxu0 0.0
    %780 = vmatpush2.msra.mxu0 0.0
    %781 = vmatprep.subr.mxu0 0.0
    %782 = vmatpush2.msra.mxu0 0.0
    %783 = vmatprep.subr.mxu0 0.0
    %784 = vmatpush2.msra.mxu0 0.0
    %785 = vmatprep.subr.mxu0 0.0
    %786 = vmatpush2.msra.mxu0 0.0
    %787 = vmatprep.subr.mxu0 0.0
    %788 = vmatpush2.msra.mxu0 0.0
    %789 = vmatprep.subr.mxu0 0.0
    %790 = vmatpush2.msra.mxu0 0.0
    %791 = vmatprep.subr.mxu0 0.0
    %792 = vmatpush2.msra.mxu0 0.0
    %793 = vmatprep.subr.mxu0 0.0
    %794 = vmatpush2.msra.mxu0 0.0
    %795 = vmatprep.subr.mxu0 0.0
    %796 = vmatpush2.msra.mxu0 0.0
    %797 = vmatprep.subr.mxu0 0.0
    %798 = vmatpush2.msra.mxu0 0.0
    %799 = vmatprep.subr.mxu0 0.0
    %800 = vmatpush2.msra.mxu0 0.0
    %801 = vmatprep.subr.mxu0 0.0
    %802 = vmatpush2.msra.mxu0 0.0
    %803 = vmatprep.subr.mxu0 0.0
    %804 = vmatpush2.msra.mxu0 0.0
    %805 = vmatprep.subr.mxu0 0.0
    %806 = vmatpush2.msra.mxu0 0.0
    %807 = vmatprep.subr.mxu0 0.0
    %808 = vmatpush2.msra.mxu0 0.0
    %809 = vmatprep.subr.mxu0 0.0
    %810 = vmatpush2.msra.mxu0 0.0
    %811 = vmatprep.mubr.f32.mxu0 0.0
    %812 = vmatmul.mubr.f32.gmra.mxu0 %v745
    %v813 = vpop.f32.mrf.mxu0
    %v814 = vadd.f32 %v744, %v813
    %v815 = vpop.f32.mrf.mxu0
    %816 = vdwg.mxu0
    %v817 = vxor.u32 %v814, 2147483648
    %v818 = vmul.f32 %v817, 1.442695
    %v819 = vpow.pop %v818
    %v820 = vadd.f32 %v819, 1.0
    %v821 = vrcp.pop %v820
    %v822 = vmul.f32 1.0, %v821
    %v823 = vtanh.pop %v814
    %v824 = vmul.f32 %v822, %v732
    %826 = vrot.lane.b32.xlu0 %v823, 64
    %v827 = vpop.permute.xlu0 %826
    %v829 = vmul.f32 %v822, %v827
    %831 = vrot.lane.b32.xlu0 %v829, 32
    %v832 = vpop.permute.xlu0 %831
    %v834 = vadd.f32 %v824, %v832
    %v835 = vtanh.pop %v834
    %837 = vrot.lane.b32.xlu0 %v835, 64
    %v838 = vpop.permute.xlu0 %837
    %v840 = vmul.f32 %v822, %v838
    %842 = vrot.lane.b32.xlu0 %v840, 32
    %v843 = vpop.permute.xlu0 %842
    %845 = vst.msk [vmem:[#allocation4 + $0xa] sm:$0x3] %vm334, %v843
    %v846 = vld [vmem:[#allocation2 + $0xc] sm:$0x3]
    %v847 = vsel %vm138, %v843, 0
    %849 = vmatprep.subr.mxu0 0.0
    %850 = vmatpush1.msra.mxu0 0.0
    %851 = vmatprep.subr.mxu0 0.0
    %852 = vmatpush1.msra.mxu0 0.0
    %853 = vmatprep.subr.mxu0 0.0
    %854 = vmatpush1.msra.mxu0 0.0
    %855 = vmatprep.subr.mxu0 0.0
    %856 = vmatpush1.msra.mxu0 0.0
    %857 = vmatprep.subr.mxu0 0.0
    %858 = vmatpush1.msra.mxu0 0.0
    %859 = vmatprep.subr.mxu0 0.0
    %860 = vmatpush1.msra.mxu0 0.0
    %861 = vmatprep.subr.mxu0 0.0
    %862 = vmatpush1.msra.mxu0 0.0
    %863 = vmatprep.subr.mxu0 0.0
    %864 = vmatpush1.msra.mxu0 0.0
    %865 = vmatprep.subr.mxu0 0.0
    %866 = vmatpush1.msra.mxu0 0.0
    %867 = vmatprep.subr.mxu0 0.0
    %868 = vmatpush1.msra.mxu0 0.0
    %869 = vmatprep.subr.mxu0 0.0
    %870 = vmatpush1.msra.mxu0 0.0
    %871 = vmatprep.subr.mxu0 0.0
    %872 = vmatpush1.msra.mxu0 0.0
    %873 = vmatprep.subr.mxu0 0.0
    %874 = vmatpush1.msra.mxu0 %v225
    %875 = vmatprep.subr.mxu0 0.0
    %876 = vmatpush1.msra.mxu0 %v224
    %877 = vmatprep.subr.mxu0 0.0
    %878 = vmatpush1.msra.mxu0 %v223
    %879 = vmatprep.subr.mxu0 0.0
    %880 = vmatpush1.msra.mxu0 %v222
    %881 = vmatprep.subr.mxu0 0.0
    %882 = vmatpush2.msra.mxu0 0.0
    %883 = vmatprep.subr.mxu0 0.0
    %884 = vmatpush2.msra.mxu0 0.0
    %885 = vmatprep.subr.mxu0 0.0
    %886 = vmatpush2.msra.mxu0 0.0
    %887 = vmatprep.subr.mxu0 0.0
    %888 = vmatpush2.msra.mxu0 0.0
    %889 = vmatprep.subr.mxu0 0.0
    %890 = vmatpush2.msra.mxu0 0.0
    %891 = vmatprep.subr.mxu0 0.0
    %892 = vmatpush2.msra.mxu0 0.0
    %893 = vmatprep.subr.mxu0 0.0
    %894 = vmatpush2.msra.mxu0 0.0
    %895 = vmatprep.subr.mxu0 0.0
    %896 = vmatpush2.msra.mxu0 0.0
    %897 = vmatprep.subr.mxu0 0.0
    %898 = vmatpush2.msra.mxu0 0.0
    %899 = vmatprep.subr.mxu0 0.0
    %900 = vmatpush2.msra.mxu0 0.0
    %901 = vmatprep.subr.mxu0 0.0
    %902 = vmatpush2.msra.mxu0 0.0
    %903 = vmatprep.subr.mxu0 0.0
    %904 = vmatpush2.msra.mxu0 0.0
    %905 = vmatprep.subr.mxu0 0.0
    %906 = vmatpush2.msra.mxu0 0.0
    %907 = vmatprep.subr.mxu0 0.0
    %908 = vmatpush2.msra.mxu0 0.0
    %909 = vmatprep.subr.mxu0 0.0
    %910 = vmatpush2.msra.mxu0 0.0
    %911 = vmatprep.subr.mxu0 0.0
    %912 = vmatpush2.msra.mxu0 0.0
    %913 = vmatprep.mubr.f32.mxu0 0.0
    %914 = vmatmul.mubr.f32.gmra.mxu0 %v847
    %v915 = vpop.f32.mrf.mxu0
    %v916 = vadd.f32 %v846, %v915
    %v917 = vpop.f32.mrf.mxu0
    %918 = vdwg.mxu0
    %v919 = vxor.u32 %v916, 2147483648
    %v920 = vmul.f32 %v919, 1.442695
    %v921 = vpow.pop %v920
    %v922 = vadd.f32 %v921, 1.0
    %v923 = vrcp.pop %v922
    %v924 = vmul.f32 1.0, %v923
    %v925 = vtanh.pop %v916
    %v926 = vmul.f32 %v924, %v834
    %928 = vrot.lane.b32.xlu0 %v925, 64
    %v929 = vpop.permute.xlu0 %928
    %v931 = vmul.f32 %v924, %v929
    %933 = vrot.lane.b32.xlu0 %v931, 32
    %v934 = vpop.permute.xlu0 %933
    %v936 = vadd.f32 %v926, %v934
    %v937 = vtanh.pop %v936
    %939 = vrot.lane.b32.xlu0 %v937, 64
    %v940 = vpop.permute.xlu0 %939
    %v942 = vmul.f32 %v924, %v940
    %944 = vrot.lane.b32.xlu0 %v942, 32
    %v945 = vpop.permute.xlu0 %944
    %947 = vst.msk [vmem:[#allocation4 + $0xc] sm:$0x3] %vm334, %v945
    %v948 = vld [vmem:[#allocation2 + $0xe] sm:$0x3]
    %v949 = vsel %vm138, %v945, 0
    %951 = vmatprep.subr.mxu0 0.0
    %952 = vmatpush1.msra.mxu0 0.0
    %953 = vmatprep.subr.mxu0 0.0
    %954 = vmatpush1.msra.mxu0 0.0
    %955 = vmatprep.subr.mxu0 0.0
    %956 = vmatpush1.msra.mxu0 0.0
    %957 = vmatprep.subr.mxu0 0.0
    %958 = vmatpush1.msra.mxu0 0.0
    %959 = vmatprep.subr.mxu0 0.0
    %960 = vmatpush1.msra.mxu0 0.0
    %961 = vmatprep.subr.mxu0 0.0
    %962 = vmatpush1.msra.mxu0 0.0
    %963 = vmatprep.subr.mxu0 0.0
    %964 = vmatpush1.msra.mxu0 0.0
    %965 = vmatprep.subr.mxu0 0.0
    %966 = vmatpush1.msra.mxu0 0.0
    %967 = vmatprep.subr.mxu0 0.0
    %968 = vmatpush1.msra.mxu0 0.0
    %969 = vmatprep.subr.mxu0 0.0
    %970 = vmatpush1.msra.mxu0 0.0
    %971 = vmatprep.subr.mxu0 0.0
    %972 = vmatpush1.msra.mxu0 0.0
    %973 = vmatprep.subr.mxu0 0.0
    %974 = vmatpush1.msra.mxu0 0.0
    %975 = vmatprep.subr.mxu0 0.0
    %976 = vmatpush1.msra.mxu0 %v225
    %977 = vmatprep.subr.mxu0 0.0
    %978 = vmatpush1.msra.mxu0 %v224
    %979 = vmatprep.subr.mxu0 0.0
    %980 = vmatpush1.msra.mxu0 %v223
    %981 = vmatprep.subr.mxu0 0.0
    %982 = vmatpush1.msra.mxu0 %v222
    %983 = vmatprep.subr.mxu0 0.0
    %984 = vmatpush2.msra.mxu0 0.0
    %985 = vmatprep.subr.mxu0 0.0
    %986 = vmatpush2.msra.mxu0 0.0
    %987 = vmatprep.subr.mxu0 0.0
    %988 = vmatpush2.msra.mxu0 0.0
    %989 = vmatprep.subr.mxu0 0.0
    %990 = vmatpush2.msra.mxu0 0.0
    %991 = vmatprep.subr.mxu0 0.0
    %992 = vmatpush2.msra.mxu0 0.0
    %993 = vmatprep.subr.mxu0 0.0
    %994 = vmatpush2.msra.mxu0 0.0
    %995 = vmatprep.subr.mxu0 0.0
    %996 = vmatpush2.msra.mxu0 0.0
    %997 = vmatprep.subr.mxu0 0.0
    %998 = vmatpush2.msra.mxu0 0.0
    %999 = vmatprep.subr.mxu0 0.0
    %1000 = vmatpush2.msra.mxu0 0.0
    %1001 = vmatprep.subr.mxu0 0.0
    %1002 = vmatpush2.msra.mxu0 0.0
    %1003 = vmatprep.subr.mxu0 0.0
    %1004 = vmatpush2.msra.mxu0 0.0
    %1005 = vmatprep.subr.mxu0 0.0
    %1006 = vmatpush2.msra.mxu0 0.0
    %1007 = vmatprep.subr.mxu0 0.0
    %1008 = vmatpush2.msra.mxu0 0.0
    %1009 = vmatprep.subr.mxu0 0.0
    %1010 = vmatpush2.msra.mxu0 0.0
    %1011 = vmatprep.subr.mxu0 0.0
    %1012 = vmatpush2.msra.mxu0 0.0
    %1013 = vmatprep.subr.mxu0 0.0
    %1014 = vmatpush2.msra.mxu0 0.0
    %1015 = vmatprep.mubr.f32.mxu0 0.0
    %1016 = vmatmul.mubr.f32.gmra.mxu0 %v949
    %v1017 = vpop.f32.mrf.mxu0
    %v1018 = vadd.f32 %v948, %v1017
    %v1019 = vpop.f32.mrf.mxu0
    %1020 = vdwg.mxu0
    %v1021 = vxor.u32 %v1018, 2147483648
    %v1022 = vmul.f32 %v1021, 1.442695
    %v1023 = vpow.pop %v1022
    %v1024 = vadd.f32 %v1023, 1.0
    %v1025 = vrcp.pop %v1024
    %v1026 = vmul.f32 1.0, %v1025
    %v1027 = vtanh.pop %v1018
    %v1028 = vmul.f32 %v1026, %v936
    %1030 = vrot.lane.b32.xlu0 %v1027, 64
    %v1031 = vpop.permute.xlu0 %1030
    %v1033 = vmul.f32 %v1026, %v1031
    %1035 = vrot.lane.b32.xlu0 %v1033, 32
    %v1036 = vpop.permute.xlu0 %1035
    %v1038 = vadd.f32 %v1028, %v1036
    %v1039 = vtanh.pop %v1038
    %1041 = vrot.lane.b32.xlu0 %v1039, 64
    %v1042 = vpop.permute.xlu0 %1041
    %v1044 = vmul.f32 %v1026, %v1042
    %1046 = vrot.lane.b32.xlu0 %v1044, 32
    %v1047 = vpop.permute.xlu0 %1046
    %1049 = vst.msk [vmem:[#allocation4 + $0xe] sm:$0x3] %vm334, %v1047
    %v1050 = vld [vmem:[#allocation4] sm:$0xff]
    %v1051 = vld [vmem:[#allocation4 + $0x8] sm:$0xff]
    %v1052 = vld [vmem:[#allocation12] sm:$0xff]
    %v1053 = vld [vmem:[#allocation12 + $0x8] sm:$0xff]
    %v1054 = vld [vmem:[#allocation12 + $0x10] sm:$0xff]
    %v1055 = vld [vmem:[#allocation12 + $0x18] sm:$0xff]
    %v1056 = vld [vmem:[%s6] sm:$0x1]
    %v1058 = vlaneseq
    %v1059 = vshrl.u32 %v1058, 7
    %v1060 = vsub.s32 0, %v1059
    %v1061 = vrot.slane %v1056, %v1060
    %v1064 = vsel %vm138, %v1050, 0
    %v1067 = vsel %vm138, %v1051, 0
    %1069 = vmatprep.subr.mxu0 0.0
    %1070 = vmatpush1.msra.mxu0 0.0
    %1071 = vmatprep.subr.mxu0 0.0
    %1072 = vmatpush1.msra.mxu0 0.0
    %1073 = vmatprep.subr.mxu0 0.0
    %1074 = vmatpush1.msra.mxu0 0.0
    %1075 = vmatprep.subr.mxu0 0.0
    %1076 = vmatpush1.msra.mxu0 0.0
    %1077 = vmatprep.subr.mxu0 0.0
    %1078 = vmatpush1.msra.mxu0 0.0
    %1079 = vmatprep.subr.mxu0 0.0
    %1080 = vmatpush1.msra.mxu0 0.0
    %1081 = vmatprep.subr.mxu0 0.0
    %1082 = vmatpush1.msra.mxu0 0.0
    %1083 = vmatprep.subr.mxu0 0.0
    %1084 = vmatpush1.msra.mxu0 0.0
    %1085 = vmatprep.subr.mxu0 0.0
    %1086 = vmatpush1.msra.mxu0 0.0
    %1087 = vmatprep.subr.mxu0 0.0
    %1088 = vmatpush1.msra.mxu0 0.0
    %1089 = vmatprep.subr.mxu0 0.0
    %1090 = vmatpush1.msra.mxu0 0.0
    %1091 = vmatprep.subr.mxu0 0.0
    %1092 = vmatpush1.msra.mxu0 0.0
    %1093 = vmatprep.subr.mxu0 0.0
    %1094 = vmatpush1.msra.mxu0 %v1055
    %1095 = vmatprep.subr.mxu0 0.0
    %1096 = vmatpush1.msra.mxu0 %v1054
    %1097 = vmatprep.subr.mxu0 0.0
    %1098 = vmatpush1.msra.mxu0 %v1053
    %1099 = vmatprep.subr.mxu0 0.0
    %1100 = vmatpush1.msra.mxu0 %v1052
    %1101 = vmatprep.subr.mxu0 0.0
    %1102 = vmatpush2.msra.mxu0 0.0
    %1103 = vmatprep.subr.mxu0 0.0
    %1104 = vmatpush2.msra.mxu0 0.0
    %1105 = vmatprep.subr.mxu0 0.0
    %1106 = vmatpush2.msra.mxu0 0.0
    %1107 = vmatprep.subr.mxu0 0.0
    %1108 = vmatpush2.msra.mxu0 0.0
    %1109 = vmatprep.subr.mxu0 0.0
    %1110 = vmatpush2.msra.mxu0 0.0
    %1111 = vmatprep.subr.mxu0 0.0
    %1112 = vmatpush2.msra.mxu0 0.0
    %1113 = vmatprep.subr.mxu0 0.0
    %1114 = vmatpush2.msra.mxu0 0.0
    %1115 = vmatprep.subr.mxu0 0.0
    %1116 = vmatpush2.msra.mxu0 0.0
    %1117 = vmatprep.subr.mxu0 0.0
    %1118 = vmatpush2.msra.mxu0 0.0
    %1119 = vmatprep.subr.mxu0 0.0
    %1120 = vmatpush2.msra.mxu0 0.0
    %1121 = vmatprep.subr.mxu0 0.0
    %1122 = vmatpush2.msra.mxu0 0.0
    %1123 = vmatprep.subr.mxu0 0.0
    %1124 = vmatpush2.msra.mxu0 0.0
    %1125 = vmatprep.subr.mxu0 0.0
    %1126 = vmatpush2.msra.mxu0 0.0
    %1127 = vmatprep.subr.mxu0 0.0
    %1128 = vmatpush2.msra.mxu0 0.0
    %1129 = vmatprep.subr.mxu0 0.0
    %1130 = vmatpush2.msra.mxu0 0.0
    %1131 = vmatprep.subr.mxu0 0.0
    %1132 = vmatpush2.msra.mxu0 0.0
    %1133 = vmatprep.mubr.f32.mxu0 0.0
    %1134 = vmatmul.mubr.f32.gmra.mxu0 %v1064
    %v1135 = vpop.f32.mrf.mxu0
    %v1136 = vadd.f32 %v1061, %v1135
    %v1137 = vpop.f32.mrf.mxu0
    %1138 = vmatprep.mubr.f32.mxu0 0.0
    %1139 = vmatmul.mubr.f32.gmra.mxu0 %v1067
    %v1140 = vpop.f32.mrf.mxu0
    %v1141 = vadd.f32 %v1061, %v1140
    %v1142 = vpop.f32.mrf.mxu0
    %1143 = vdwg.mxu0
    %1144 = vst [vmem:[#allocation3] sm:$0xff] %v1136
    %1145 = vst [vmem:[#allocation3 + $0x8] sm:$0xff] %v1141
    %v1146 = vld [vmem:[#allocation14] sm:$0xff]
    %v1147 = vld [vmem:[#allocation14 + $0x8] sm:$0xff]
    %v1148 = vld [vmem:[#allocation14 + $0x10] sm:$0xff]
    %v1149 = vld [vmem:[#allocation14 + $0x18] sm:$0xff]
    %s1150 = scalar_lea.vmem %s9, 2
    %v1151 = vld [vmem:[%s1150] sm:$0x3]
    %s1152 = scalar_lea.vmem %s10, 2
    %v1153 = vld [vmem:[%s1152] sm:$0x3]
    %v1154 = vld [vmem:[#allocation3] sm:$0x3]
    %v1156 = vsel %vm138, %v1151, 0
    %1158 = vmatprep.subr.mxu0 0.0
    %1159 = vmatpush1.msra.mxu0 0.0
    %1160 = vmatprep.subr.mxu0 0.0
    %1161 = vmatpush1.msra.mxu0 0.0
    %1162 = vmatprep.subr.mxu0 0.0
    %1163 = vmatpush1.msra.mxu0 0.0
    %1164 = vmatprep.subr.mxu0 0.0
    %1165 = vmatpush1.msra.mxu0 0.0
    %1166 = vmatprep.subr.mxu0 0.0
    %1167 = vmatpush1.msra.mxu0 0.0
    %1168 = vmatprep.subr.mxu0 0.0
    %1169 = vmatpush1.msra.mxu0 0.0
    %1170 = vmatprep.subr.mxu0 0.0
    %1171 = vmatpush1.msra.mxu0 0.0
    %1172 = vmatprep.subr.mxu0 0.0
    %1173 = vmatpush1.msra.mxu0 0.0
    %1174 = vmatprep.subr.mxu0 0.0
    %1175 = vmatpush1.msra.mxu0 0.0
    %1176 = vmatprep.subr.mxu0 0.0
    %1177 = vmatpush1.msra.mxu0 0.0
    %1178 = vmatprep.subr.mxu0 0.0
    %1179 = vmatpush1.msra.mxu0 0.0
    %1180 = vmatprep.subr.mxu0 0.0
    %1181 = vmatpush1.msra.mxu0 0.0
    %1182 = vmatprep.subr.mxu0 0.0
    %1183 = vmatpush1.msra.mxu0 %v1149
    %1184 = vmatprep.subr.mxu0 0.0
    %1185 = vmatpush1.msra.mxu0 %v1148
    %1186 = vmatprep.subr.mxu0 0.0
    %1187 = vmatpush1.msra.mxu0 %v1147
    %1188 = vmatprep.subr.mxu0 0.0
    %1189 = vmatpush1.msra.mxu0 %v1146
    %1190 = vmatprep.subr.mxu0 0.0
    %1191 = vmatpush2.msra.mxu0 0.0
    %1192 = vmatprep.subr.mxu0 0.0
    %1193 = vmatpush2.msra.mxu0 0.0
    %1194 = vmatprep.subr.mxu0 0.0
    %1195 = vmatpush2.msra.mxu0 0.0
    %1196 = vmatprep.subr.mxu0 0.0
    %1197 = vmatpush2.msra.mxu0 0.0
    %1198 = vmatprep.subr.mxu0 0.0
    %1199 = vmatpush2.msra.mxu0 0.0
    %1200 = vmatprep.subr.mxu0 0.0
    %1201 = vmatpush2.msra.mxu0 0.0
    %1202 = vmatprep.subr.mxu0 0.0
    %1203 = vmatpush2.msra.mxu0 0.0
    %1204 = vmatprep.subr.mxu0 0.0
    %1205 = vmatpush2.msra.mxu0 0.0
    %1206 = vmatprep.subr.mxu0 0.0
    %1207 = vmatpush2.msra.mxu0 0.0
    %1208 = vmatprep.subr.mxu0 0.0
    %1209 = vmatpush2.msra.mxu0 0.0
    %1210 = vmatprep.subr.mxu0 0.0
    %1211 = vmatpush2.msra.mxu0 0.0
    %1212 = vmatprep.subr.mxu0 0.0
    %1213 = vmatpush2.msra.mxu0 0.0
    %1214 = vmatprep.subr.mxu0 0.0
    %1215 = vmatpush2.msra.mxu0 0.0
    %1216 = vmatprep.subr.mxu0 0.0
    %1217 = vmatpush2.msra.mxu0 0.0
    %1218 = vmatprep.subr.mxu0 0.0
    %1219 = vmatpush2.msra.mxu0 0.0
    %1220 = vmatprep.subr.mxu0 0.0
    %1221 = vmatpush2.msra.mxu0 0.0
    %1222 = vmatprep.mubr.f32.mxu0 0.0
    %1223 = vmatmul.mubr.f32.gmra.mxu0 %v1156
    %v1224 = vpop.f32.mrf.mxu0
    %v1225 = vadd.f32 %v1154, %v1224
    %v1226 = vpop.f32.mrf.mxu0
    %1227 = vdwg.mxu0
    %v1228 = vxor.u32 %v1225, 2147483648
    %v1229 = vmul.f32 %v1228, 1.442695
    %v1230 = vpow.pop %v1229
    %v1231 = vadd.f32 %v1230, 1.0
    %v1232 = vrcp.pop %v1231
    %v1233 = vmul.f32 1.0, %v1232
    %v1234 = vtanh.pop %v1225
    %1236 = vrot.lane.b32.xlu0 %v1153, 32
    %v1237 = vpop.permute.xlu0 %1236
    %v1239 = vmul.f32 %v1233, %v1237
    %1241 = vrot.lane.b32.xlu0 %v1234, 64
    %v1242 = vpop.permute.xlu0 %1241
    %v1244 = vmul.f32 %v1233, %v1242
    %1246 = vrot.lane.b32.xlu0 %v1244, 32
    %v1247 = vpop.permute.xlu0 %1246
    %v1249 = vadd.f32 %v1239, %v1247
    %v1250 = vtanh.pop %v1249
    %1252 = vrot.lane.b32.xlu0 %v1250, 64
    %v1253 = vpop.permute.xlu0 %1252
    %v1255 = vmul.f32 %v1233, %v1253
    %1257 = vrot.lane.b32.xlu0 %v1255, 32
    %v1258 = vpop.permute.xlu0 %1257
    %1260 = vst.msk [vmem:[#allocation5] sm:$0x3] %vm334, %v1258
    %v1261 = vld [vmem:[#allocation3 + $0x2] sm:$0x3]
    %v1262 = vsel %vm138, %v1258, 0
    %1264 = vmatprep.subr.mxu0 0.0
    %1265 = vmatpush1.msra.mxu0 0.0
    %1266 = vmatprep.subr.mxu0 0.0
    %1267 = vmatpush1.msra.mxu0 0.0
    %1268 = vmatprep.subr.mxu0 0.0
    %1269 = vmatpush1.msra.mxu0 0.0
    %1270 = vmatprep.subr.mxu0 0.0
    %1271 = vmatpush1.msra.mxu0 0.0
    %1272 = vmatprep.subr.mxu0 0.0
    %1273 = vmatpush1.msra.mxu0 0.0
    %1274 = vmatprep.subr.mxu0 0.0
    %1275 = vmatpush1.msra.mxu0 0.0
    %1276 = vmatprep.subr.mxu0 0.0
    %1277 = vmatpush1.msra.mxu0 0.0
    %1278 = vmatprep.subr.mxu0 0.0
    %1279 = vmatpush1.msra.mxu0 0.0
    %1280 = vmatprep.subr.mxu0 0.0
    %1281 = vmatpush1.msra.mxu0 0.0
    %1282 = vmatprep.subr.mxu0 0.0
    %1283 = vmatpush1.msra.mxu0 0.0
    %1284 = vmatprep.subr.mxu0 0.0
    %1285 = vmatpush1.msra.mxu0 0.0
    %1286 = vmatprep.subr.mxu0 0.0
    %1287 = vmatpush1.msra.mxu0 0.0
    %1288 = vmatprep.subr.mxu0 0.0
    %1289 = vmatpush1.msra.mxu0 %v1149
    %1290 = vmatprep.subr.mxu0 0.0
    %1291 = vmatpush1.msra.mxu0 %v1148
    %1292 = vmatprep.subr.mxu0 0.0
    %1293 = vmatpush1.msra.mxu0 %v1147
    %1294 = vmatprep.subr.mxu0 0.0
    %1295 = vmatpush1.msra.mxu0 %v1146
    %1296 = vmatprep.subr.mxu0 0.0
    %1297 = vmatpush2.msra.mxu0 0.0
    %1298 = vmatprep.subr.mxu0 0.0
    %1299 = vmatpush2.msra.mxu0 0.0
    %1300 = vmatprep.subr.mxu0 0.0
    %1301 = vmatpush2.msra.mxu0 0.0
    %1302 = vmatprep.subr.mxu0 0.0
    %1303 = vmatpush2.msra.mxu0 0.0
    %1304 = vmatprep.subr.mxu0 0.0
    %1305 = vmatpush2.msra.mxu0 0.0
    %1306 = vmatprep.subr.mxu0 0.0
    %1307 = vmatpush2.msra.mxu0 0.0
    %1308 = vmatprep.subr.mxu0 0.0
    %1309 = vmatpush2.msra.mxu0 0.0
    %1310 = vmatprep.subr.mxu0 0.0
    %1311 = vmatpush2.msra.mxu0 0.0
    %1312 = vmatprep.subr.mxu0 0.0
    %1313 = vmatpush2.msra.mxu0 0.0
    %1314 = vmatprep.subr.mxu0 0.0
    %1315 = vmatpush2.msra.mxu0 0.0
    %1316 = vmatprep.subr.mxu0 0.0
    %1317 = vmatpush2.msra.mxu0 0.0
    %1318 = vmatprep.subr.mxu0 0.0
    %1319 = vmatpush2.msra.mxu0 0.0
    %1320 = vmatprep.subr.mxu0 0.0
    %1321 = vmatpush2.msra.mxu0 0.0
    %1322 = vmatprep.subr.mxu0 0.0
    %1323 = vmatpush2.msra.mxu0 0.0
    %1324 = vmatprep.subr.mxu0 0.0
    %1325 = vmatpush2.msra.mxu0 0.0
    %1326 = vmatprep.subr.mxu0 0.0
    %1327 = vmatpush2.msra.mxu0 0.0
    %1328 = vmatprep.mubr.f32.mxu0 0.0
    %1329 = vmatmul.mubr.f32.gmra.mxu0 %v1262
    %v1330 = vpop.f32.mrf.mxu0
    %v1331 = vadd.f32 %v1261, %v1330
    %v1332 = vpop.f32.mrf.mxu0
    %1333 = vdwg.mxu0
    %v1334 = vxor.u32 %v1331, 2147483648
    %v1335 = vmul.f32 %v1334, 1.442695
    %v1336 = vpow.pop %v1335
    %v1337 = vadd.f32 %v1336, 1.0
    %v1338 = vrcp.pop %v1337
    %v1339 = vmul.f32 1.0, %v1338
    %v1340 = vtanh.pop %v1331
    %v1341 = vmul.f32 %v1339, %v1249
    %1343 = vrot.lane.b32.xlu0 %v1340, 64
    %v1344 = vpop.permute.xlu0 %1343
    %v1346 = vmul.f32 %v1339, %v1344
    %1348 = vrot.lane.b32.xlu0 %v1346, 32
    %v1349 = vpop.permute.xlu0 %1348
    %v1351 = vadd.f32 %v1341, %v1349
    %v1352 = vtanh.pop %v1351
    %1354 = vrot.lane.b32.xlu0 %v1352, 64
    %v1355 = vpop.permute.xlu0 %1354
    %v1357 = vmul.f32 %v1339, %v1355
    %1359 = vrot.lane.b32.xlu0 %v1357, 32
    %v1360 = vpop.permute.xlu0 %1359
    %1362 = vst.msk [vmem:[#allocation5 + $0x2] sm:$0x3] %vm334, %v1360
    %v1363 = vld [vmem:[#allocation3 + $0x4] sm:$0x3]
    %v1364 = vsel %vm138, %v1360, 0
    %1366 = vmatprep.subr.mxu0 0.0
    %1367 = vmatpush1.msra.mxu0 0.0
    %1368 = vmatprep.subr.mxu0 0.0
    %1369 = vmatpush1.msra.mxu0 0.0
    %1370 = vmatprep.subr.mxu0 0.0
    %1371 = vmatpush1.msra.mxu0 0.0
    %1372 = vmatprep.subr.mxu0 0.0
    %1373 = vmatpush1.msra.mxu0 0.0
    %1374 = vmatprep.subr.mxu0 0.0
    %1375 = vmatpush1.msra.mxu0 0.0
    %1376 = vmatprep.subr.mxu0 0.0
    %1377 = vmatpush1.msra.mxu0 0.0
    %1378 = vmatprep.subr.mxu0 0.0
    %1379 = vmatpush1.msra.mxu0 0.0
    %1380 = vmatprep.subr.mxu0 0.0
    %1381 = vmatpush1.msra.mxu0 0.0
    %1382 = vmatprep.subr.mxu0 0.0
    %1383 = vmatpush1.msra.mxu0 0.0
    %1384 = vmatprep.subr.mxu0 0.0
    %1385 = vmatpush1.msra.mxu0 0.0
    %1386 = vmatprep.subr.mxu0 0.0
    %1387 = vmatpush1.msra.mxu0 0.0
    %1388 = vmatprep.subr.mxu0 0.0
    %1389 = vmatpush1.msra.mxu0 0.0
    %1390 = vmatprep.subr.mxu0 0.0
    %1391 = vmatpush1.msra.mxu0 %v1149
    %1392 = vmatprep.subr.mxu0 0.0
    %1393 = vmatpush1.msra.mxu0 %v1148
    %1394 = vmatprep.subr.mxu0 0.0
    %1395 = vmatpush1.msra.mxu0 %v1147
    %1396 = vmatprep.subr.mxu0 0.0
    %1397 = vmatpush1.msra.mxu0 %v1146
    %1398 = vmatprep.subr.mxu0 0.0
    %1399 = vmatpush2.msra.mxu0 0.0
    %1400 = vmatprep.subr.mxu0 0.0
    %1401 = vmatpush2.msra.mxu0 0.0
    %1402 = vmatprep.subr.mxu0 0.0
    %1403 = vmatpush2.msra.mxu0 0.0
    %1404 = vmatprep.subr.mxu0 0.0
    %1405 = vmatpush2.msra.mxu0 0.0
    %1406 = vmatprep.subr.mxu0 0.0
    %1407 = vmatpush2.msra.mxu0 0.0
    %1408 = vmatprep.subr.mxu0 0.0
    %1409 = vmatpush2.msra.mxu0 0.0
    %1410 = vmatprep.subr.mxu0 0.0
    %1411 = vmatpush2.msra.mxu0 0.0
    %1412 = vmatprep.subr.mxu0 0.0
    %1413 = vmatpush2.msra.mxu0 0.0
    %1414 = vmatprep.subr.mxu0 0.0
    %1415 = vmatpush2.msra.mxu0 0.0
    %1416 = vmatprep.subr.mxu0 0.0
    %1417 = vmatpush2.msra.mxu0 0.0
    %1418 = vmatprep.subr.mxu0 0.0
    %1419 = vmatpush2.msra.mxu0 0.0
    %1420 = vmatprep.subr.mxu0 0.0
    %1421 = vmatpush2.msra.mxu0 0.0
    %1422 = vmatprep.subr.mxu0 0.0
    %1423 = vmatpush2.msra.mxu0 0.0
    %1424 = vmatprep.subr.mxu0 0.0
    %1425 = vmatpush2.msra.mxu0 0.0
    %1426 = vmatprep.subr.mxu0 0.0
    %1427 = vmatpush2.msra.mxu0 0.0
    %1428 = vmatprep.subr.mxu0 0.0
    %1429 = vmatpush2.msra.mxu0 0.0
    %1430 = vmatprep.mubr.f32.mxu0 0.0
    %1431 = vmatmul.mubr.f32.gmra.mxu0 %v1364
    %v1432 = vpop.f32.mrf.mxu0
    %v1433 = vadd.f32 %v1363, %v1432
    %v1434 = vpop.f32.mrf.mxu0
    %1435 = vdwg.mxu0
    %v1436 = vxor.u32 %v1433, 2147483648
    %v1437 = vmul.f32 %v1436, 1.442695
    %v1438 = vpow.pop %v1437
    %v1439 = vadd.f32 %v1438, 1.0
    %v1440 = vrcp.pop %v1439
    %v1441 = vmul.f32 1.0, %v1440
    %v1442 = vtanh.pop %v1433
    %v1443 = vmul.f32 %v1441, %v1351
    %1445 = vrot.lane.b32.xlu0 %v1442, 64
    %v1446 = vpop.permute.xlu0 %1445
    %v1448 = vmul.f32 %v1441, %v1446
    %1450 = vrot.lane.b32.xlu0 %v1448, 32
    %v1451 = vpop.permute.xlu0 %1450
    %v1453 = vadd.f32 %v1443, %v1451
    %v1454 = vtanh.pop %v1453
    %1456 = vrot.lane.b32.xlu0 %v1454, 64
    %v1457 = vpop.permute.xlu0 %1456
    %v1459 = vmul.f32 %v1441, %v1457
    %1461 = vrot.lane.b32.xlu0 %v1459, 32
    %v1462 = vpop.permute.xlu0 %1461
    %1464 = vst.msk [vmem:[#allocation5 + $0x4] sm:$0x3] %vm334, %v1462
    %v1465 = vld [vmem:[#allocation3 + $0x6] sm:$0x3]
    %v1466 = vsel %vm138, %v1462, 0
    %1468 = vmatprep.subr.mxu0 0.0
    %1469 = vmatpush1.msra.mxu0 0.0
    %1470 = vmatprep.subr.mxu0 0.0
    %1471 = vmatpush1.msra.mxu0 0.0
    %1472 = vmatprep.subr.mxu0 0.0
    %1473 = vmatpush1.msra.mxu0 0.0
    %1474 = vmatprep.subr.mxu0 0.0
    %1475 = vmatpush1.msra.mxu0 0.0
    %1476 = vmatprep.subr.mxu0 0.0
    %1477 = vmatpush1.msra.mxu0 0.0
    %1478 = vmatprep.subr.mxu0 0.0
    %1479 = vmatpush1.msra.mxu0 0.0
    %1480 = vmatprep.subr.mxu0 0.0
    %1481 = vmatpush1.msra.mxu0 0.0
    %1482 = vmatprep.subr.mxu0 0.0
    %1483 = vmatpush1.msra.mxu0 0.0
    %1484 = vmatprep.subr.mxu0 0.0
    %1485 = vmatpush1.msra.mxu0 0.0
    %1486 = vmatprep.subr.mxu0 0.0
    %1487 = vmatpush1.msra.mxu0 0.0
    %1488 = vmatprep.subr.mxu0 0.0
    %1489 = vmatpush1.msra.mxu0 0.0
    %1490 = vmatprep.subr.mxu0 0.0
    %1491 = vmatpush1.msra.mxu0 0.0
    %1492 = vmatprep.subr.mxu0 0.0
    %1493 = vmatpush1.msra.mxu0 %v1149
    %1494 = vmatprep.subr.mxu0 0.0
    %1495 = vmatpush1.msra.mxu0 %v1148
    %1496 = vmatprep.subr.mxu0 0.0
    %1497 = vmatpush1.msra.mxu0 %v1147
    %1498 = vmatprep.subr.mxu0 0.0
    %1499 = vmatpush1.msra.mxu0 %v1146
    %1500 = vmatprep.subr.mxu0 0.0
    %1501 = vmatpush2.msra.mxu0 0.0
    %1502 = vmatprep.subr.mxu0 0.0
    %1503 = vmatpush2.msra.mxu0 0.0
    %1504 = vmatprep.subr.mxu0 0.0
    %1505 = vmatpush2.msra.mxu0 0.0
    %1506 = vmatprep.subr.mxu0 0.0
    %1507 = vmatpush2.msra.mxu0 0.0
    %1508 = vmatprep.subr.mxu0 0.0
    %1509 = vmatpush2.msra.mxu0 0.0
    %1510 = vmatprep.subr.mxu0 0.0
    %1511 = vmatpush2.msra.mxu0 0.0
    %1512 = vmatprep.subr.mxu0 0.0
    %1513 = vmatpush2.msra.mxu0 0.0
    %1514 = vmatprep.subr.mxu0 0.0
    %1515 = vmatpush2.msra.mxu0 0.0
    %1516 = vmatprep.subr.mxu0 0.0
    %1517 = vmatpush2.msra.mxu0 0.0
    %1518 = vmatprep.subr.mxu0 0.0
    %1519 = vmatpush2.msra.mxu0 0.0
    %1520 = vmatprep.subr.mxu0 0.0
    %1521 = vmatpush2.msra.mxu0 0.0
    %1522 = vmatprep.subr.mxu0 0.0
    %1523 = vmatpush2.msra.mxu0 0.0
    %1524 = vmatprep.subr.mxu0 0.0
    %1525 = vmatpush2.msra.mxu0 0.0
    %1526 = vmatprep.subr.mxu0 0.0
    %1527 = vmatpush2.msra.mxu0 0.0
    %1528 = vmatprep.subr.mxu0 0.0
    %1529 = vmatpush2.msra.mxu0 0.0
    %1530 = vmatprep.subr.mxu0 0.0
    %1531 = vmatpush2.msra.mxu0 0.0
    %1532 = vmatprep.mubr.f32.mxu0 0.0
    %1533 = vmatmul.mubr.f32.gmra.mxu0 %v1466
    %v1534 = vpop.f32.mrf.mxu0
    %v1535 = vadd.f32 %v1465, %v1534
    %v1536 = vpop.f32.mrf.mxu0
    %1537 = vdwg.mxu0
    %v1538 = vxor.u32 %v1535, 2147483648
    %v1539 = vmul.f32 %v1538, 1.442695
    %v1540 = vpow.pop %v1539
    %v1541 = vadd.f32 %v1540, 1.0
    %v1542 = vrcp.pop %v1541
    %v1543 = vmul.f32 1.0, %v1542
    %v1544 = vtanh.pop %v1535
    %v1545 = vmul.f32 %v1543, %v1453
    %1547 = vrot.lane.b32.xlu0 %v1544, 64
    %v1548 = vpop.permute.xlu0 %1547
    %v1550 = vmul.f32 %v1543, %v1548
    %1552 = vrot.lane.b32.xlu0 %v1550, 32
    %v1553 = vpop.permute.xlu0 %1552
    %v1555 = vadd.f32 %v1545, %v1553
    %v1556 = vtanh.pop %v1555
    %1558 = vrot.lane.b32.xlu0 %v1556, 64
    %v1559 = vpop.permute.xlu0 %1558
    %v1561 = vmul.f32 %v1543, %v1559
    %1563 = vrot.lane.b32.xlu0 %v1561, 32
    %v1564 = vpop.permute.xlu0 %1563
    %1566 = vst.msk [vmem:[#allocation5 + $0x6] sm:$0x3] %vm334, %v1564
    %v1567 = vld [vmem:[#allocation3 + $0x8] sm:$0x3]
    %v1568 = vsel %vm138, %v1564, 0
    %1570 = vmatprep.subr.mxu0 0.0
    %1571 = vmatpush1.msra.mxu0 0.0
    %1572 = vmatprep.subr.mxu0 0.0
    %1573 = vmatpush1.msra.mxu0 0.0
    %1574 = vmatprep.subr.mxu0 0.0
    %1575 = vmatpush1.msra.mxu0 0.0
    %1576 = vmatprep.subr.mxu0 0.0
    %1577 = vmatpush1.msra.mxu0 0.0
    %1578 = vmatprep.subr.mxu0 0.0
    %1579 = vmatpush1.msra.mxu0 0.0
    %1580 = vmatprep.subr.mxu0 0.0
    %1581 = vmatpush1.msra.mxu0 0.0
    %1582 = vmatprep.subr.mxu0 0.0
    %1583 = vmatpush1.msra.mxu0 0.0
    %1584 = vmatprep.subr.mxu0 0.0
    %1585 = vmatpush1.msra.mxu0 0.0
    %1586 = vmatprep.subr.mxu0 0.0
    %1587 = vmatpush1.msra.mxu0 0.0
    %1588 = vmatprep.subr.mxu0 0.0
    %1589 = vmatpush1.msra.mxu0 0.0
    %1590 = vmatprep.subr.mxu0 0.0
    %1591 = vmatpush1.msra.mxu0 0.0
    %1592 = vmatprep.subr.mxu0 0.0
    %1593 = vmatpush1.msra.mxu0 0.0
    %1594 = vmatprep.subr.mxu0 0.0
    %1595 = vmatpush1.msra.mxu0 %v1149
    %1596 = vmatprep.subr.mxu0 0.0
    %1597 = vmatpush1.msra.mxu0 %v1148
    %1598 = vmatprep.subr.mxu0 0.0
    %1599 = vmatpush1.msra.mxu0 %v1147
    %1600 = vmatprep.subr.mxu0 0.0
    %1601 = vmatpush1.msra.mxu0 %v1146
    %1602 = vmatprep.subr.mxu0 0.0
    %1603 = vmatpush2.msra.mxu0 0.0
    %1604 = vmatprep.subr.mxu0 0.0
    %1605 = vmatpush2.msra.mxu0 0.0
    %1606 = vmatprep.subr.mxu0 0.0
    %1607 = vmatpush2.msra.mxu0 0.0
    %1608 = vmatprep.subr.mxu0 0.0
    %1609 = vmatpush2.msra.mxu0 0.0
    %1610 = vmatprep.subr.mxu0 0.0
    %1611 = vmatpush2.msra.mxu0 0.0
    %1612 = vmatprep.subr.mxu0 0.0
    %1613 = vmatpush2.msra.mxu0 0.0
    %1614 = vmatprep.subr.mxu0 0.0
    %1615 = vmatpush2.msra.mxu0 0.0
    %1616 = vmatprep.subr.mxu0 0.0
    %1617 = vmatpush2.msra.mxu0 0.0
    %1618 = vmatprep.subr.mxu0 0.0
    %1619 = vmatpush2.msra.mxu0 0.0
    %1620 = vmatprep.subr.mxu0 0.0
    %1621 = vmatpush2.msra.mxu0 0.0
    %1622 = vmatprep.subr.mxu0 0.0
    %1623 = vmatpush2.msra.mxu0 0.0
    %1624 = vmatprep.subr.mxu0 0.0
    %1625 = vmatpush2.msra.mxu0 0.0
    %1626 = vmatprep.subr.mxu0 0.0
    %1627 = vmatpush2.msra.mxu0 0.0
    %1628 = vmatprep.subr.mxu0 0.0
    %1629 = vmatpush2.msra.mxu0 0.0
    %1630 = vmatprep.subr.mxu0 0.0
    %1631 = vmatpush2.msra.mxu0 0.0
    %1632 = vmatprep.subr.mxu0 0.0
    %1633 = vmatpush2.msra.mxu0 0.0
    %1634 = vmatprep.mubr.f32.mxu0 0.0
    %1635 = vmatmul.mubr.f32.gmra.mxu0 %v1568
    %v1636 = vpop.f32.mrf.mxu0
    %v1637 = vadd.f32 %v1567, %v1636
    %v1638 = vpop.f32.mrf.mxu0
    %1639 = vdwg.mxu0
    %v1640 = vxor.u32 %v1637, 2147483648
    %v1641 = vmul.f32 %v1640, 1.442695
    %v1642 = vpow.pop %v1641
    %v1643 = vadd.f32 %v1642, 1.0
    %v1644 = vrcp.pop %v1643
    %v1645 = vmul.f32 1.0, %v1644
    %v1646 = vtanh.pop %v1637
    %v1647 = vmul.f32 %v1645, %v1555
    %1649 = vrot.lane.b32.xlu0 %v1646, 64
    %v1650 = vpop.permute.xlu0 %1649
    %v1652 = vmul.f32 %v1645, %v1650
    %1654 = vrot.lane.b32.xlu0 %v1652, 32
    %v1655 = vpop.permute.xlu0 %1654
    %v1657 = vadd.f32 %v1647, %v1655
    %v1658 = vtanh.pop %v1657
    %1660 = vrot.lane.b32.xlu0 %v1658, 64
    %v1661 = vpop.permute.xlu0 %1660
    %v1663 = vmul.f32 %v1645, %v1661
    %1665 = vrot.lane.b32.xlu0 %v1663, 32
    %v1666 = vpop.permute.xlu0 %1665
    %1668 = vst.msk [vmem:[#allocation5 + $0x8] sm:$0x3] %vm334, %v1666
    %v1669 = vld [vmem:[#allocation3 + $0xa] sm:$0x3]
    %v1670 = vsel %vm138, %v1666, 0
    %1672 = vmatprep.subr.mxu0 0.0
    %1673 = vmatpush1.msra.mxu0 0.0
    %1674 = vmatprep.subr.mxu0 0.0
    %1675 = vmatpush1.msra.mxu0 0.0
    %1676 = vmatprep.subr.mxu0 0.0
    %1677 = vmatpush1.msra.mxu0 0.0
    %1678 = vmatprep.subr.mxu0 0.0
    %1679 = vmatpush1.msra.mxu0 0.0
    %1680 = vmatprep.subr.mxu0 0.0
    %1681 = vmatpush1.msra.mxu0 0.0
    %1682 = vmatprep.subr.mxu0 0.0
    %1683 = vmatpush1.msra.mxu0 0.0
    %1684 = vmatprep.subr.mxu0 0.0
    %1685 = vmatpush1.msra.mxu0 0.0
    %1686 = vmatprep.subr.mxu0 0.0
    %1687 = vmatpush1.msra.mxu0 0.0
    %1688 = vmatprep.subr.mxu0 0.0
    %1689 = vmatpush1.msra.mxu0 0.0
    %1690 = vmatprep.subr.mxu0 0.0
    %1691 = vmatpush1.msra.mxu0 0.0
    %1692 = vmatprep.subr.mxu0 0.0
    %1693 = vmatpush1.msra.mxu0 0.0
    %1694 = vmatprep.subr.mxu0 0.0
    %1695 = vmatpush1.msra.mxu0 0.0
    %1696 = vmatprep.subr.mxu0 0.0
    %1697 = vmatpush1.msra.mxu0 %v1149
    %1698 = vmatprep.subr.mxu0 0.0
    %1699 = vmatpush1.msra.mxu0 %v1148
    %1700 = vmatprep.subr.mxu0 0.0
    %1701 = vmatpush1.msra.mxu0 %v1147
    %1702 = vmatprep.subr.mxu0 0.0
    %1703 = vmatpush1.msra.mxu0 %v1146
    %1704 = vmatprep.subr.mxu0 0.0
    %1705 = vmatpush2.msra.mxu0 0.0
    %1706 = vmatprep.subr.mxu0 0.0
    %1707 = vmatpush2.msra.mxu0 0.0
    %1708 = vmatprep.subr.mxu0 0.0
    %1709 = vmatpush2.msra.mxu0 0.0
    %1710 = vmatprep.subr.mxu0 0.0
    %1711 = vmatpush2.msra.mxu0 0.0
    %1712 = vmatprep.subr.mxu0 0.0
    %1713 = vmatpush2.msra.mxu0 0.0
    %1714 = vmatprep.subr.mxu0 0.0
    %1715 = vmatpush2.msra.mxu0 0.0
    %1716 = vmatprep.subr.mxu0 0.0
    %1717 = vmatpush2.msra.mxu0 0.0
    %1718 = vmatprep.subr.mxu0 0.0
    %1719 = vmatpush2.msra.mxu0 0.0
    %1720 = vmatprep.subr.mxu0 0.0
    %1721 = vmatpush2.msra.mxu0 0.0
    %1722 = vmatprep.subr.mxu0 0.0
    %1723 = vmatpush2.msra.mxu0 0.0
    %1724 = vmatprep.subr.mxu0 0.0
    %1725 = vmatpush2.msra.mxu0 0.0
    %1726 = vmatprep.subr.mxu0 0.0
    %1727 = vmatpush2.msra.mxu0 0.0
    %1728 = vmatprep.subr.mxu0 0.0
    %1729 = vmatpush2.msra.mxu0 0.0
    %1730 = vmatprep.subr.mxu0 0.0
    %1731 = vmatpush2.msra.mxu0 0.0
    %1732 = vmatprep.subr.mxu0 0.0
    %1733 = vmatpush2.msra.mxu0 0.0
    %1734 = vmatprep.subr.mxu0 0.0
    %1735 = vmatpush2.msra.mxu0 0.0
    %1736 = vmatprep.mubr.f32.mxu0 0.0
    %1737 = vmatmul.mubr.f32.gmra.mxu0 %v1670
    %v1738 = vpop.f32.mrf.mxu0
    %v1739 = vadd.f32 %v1669, %v1738
    %v1740 = vpop.f32.mrf.mxu0
    %1741 = vdwg.mxu0
    %v1742 = vxor.u32 %v1739, 2147483648
    %v1743 = vmul.f32 %v1742, 1.442695
    %v1744 = vpow.pop %v1743
    %v1745 = vadd.f32 %v1744, 1.0
    %v1746 = vrcp.pop %v1745
    %v1747 = vmul.f32 1.0, %v1746
    %v1748 = vtanh.pop %v1739
    %v1749 = vmul.f32 %v1747, %v1657
    %1751 = vrot.lane.b32.xlu0 %v1748, 64
    %v1752 = vpop.permute.xlu0 %1751
    %v1754 = vmul.f32 %v1747, %v1752
    %1756 = vrot.lane.b32.xlu0 %v1754, 32
    %v1757 = vpop.permute.xlu0 %1756
    %v1759 = vadd.f32 %v1749, %v1757
    %v1760 = vtanh.pop %v1759
    %1762 = vrot.lane.b32.xlu0 %v1760, 64
    %v1763 = vpop.permute.xlu0 %1762
    %v1765 = vmul.f32 %v1747, %v1763
    %1767 = vrot.lane.b32.xlu0 %v1765, 32
    %v1768 = vpop.permute.xlu0 %1767
    %1770 = vst.msk [vmem:[#allocation5 + $0xa] sm:$0x3] %vm334, %v1768
    %v1771 = vld [vmem:[#allocation3 + $0xc] sm:$0x3]
    %v1772 = vsel %vm138, %v1768, 0
    %1774 = vmatprep.subr.mxu0 0.0
    %1775 = vmatpush1.msra.mxu0 0.0
    %1776 = vmatprep.subr.mxu0 0.0
    %1777 = vmatpush1.msra.mxu0 0.0
    %1778 = vmatprep.subr.mxu0 0.0
    %1779 = vmatpush1.msra.mxu0 0.0
    %1780 = vmatprep.subr.mxu0 0.0
    %1781 = vmatpush1.msra.mxu0 0.0
    %1782 = vmatprep.subr.mxu0 0.0
    %1783 = vmatpush1.msra.mxu0 0.0
    %1784 = vmatprep.subr.mxu0 0.0
    %1785 = vmatpush1.msra.mxu0 0.0
    %1786 = vmatprep.subr.mxu0 0.0
    %1787 = vmatpush1.msra.mxu0 0.0
    %1788 = vmatprep.subr.mxu0 0.0
    %1789 = vmatpush1.msra.mxu0 0.0
    %1790 = vmatprep.subr.mxu0 0.0
    %1791 = vmatpush1.msra.mxu0 0.0
    %1792 = vmatprep.subr.mxu0 0.0
    %1793 = vmatpush1.msra.mxu0 0.0
    %1794 = vmatprep.subr.mxu0 0.0
    %1795 = vmatpush1.msra.mxu0 0.0
    %1796 = vmatprep.subr.mxu0 0.0
    %1797 = vmatpush1.msra.mxu0 0.0
    %1798 = vmatprep.subr.mxu0 0.0
    %1799 = vmatpush1.msra.mxu0 %v1149
    %1800 = vmatprep.subr.mxu0 0.0
    %1801 = vmatpush1.msra.mxu0 %v1148
    %1802 = vmatprep.subr.mxu0 0.0
    %1803 = vmatpush1.msra.mxu0 %v1147
    %1804 = vmatprep.subr.mxu0 0.0
    %1805 = vmatpush1.msra.mxu0 %v1146
    %1806 = vmatprep.subr.mxu0 0.0
    %1807 = vmatpush2.msra.mxu0 0.0
    %1808 = vmatprep.subr.mxu0 0.0
    %1809 = vmatpush2.msra.mxu0 0.0
    %1810 = vmatprep.subr.mxu0 0.0
    %1811 = vmatpush2.msra.mxu0 0.0
    %1812 = vmatprep.subr.mxu0 0.0
    %1813 = vmatpush2.msra.mxu0 0.0
    %1814 = vmatprep.subr.mxu0 0.0
    %1815 = vmatpush2.msra.mxu0 0.0
    %1816 = vmatprep.subr.mxu0 0.0
    %1817 = vmatpush2.msra.mxu0 0.0
    %1818 = vmatprep.subr.mxu0 0.0
    %1819 = vmatpush2.msra.mxu0 0.0
    %1820 = vmatprep.subr.mxu0 0.0
    %1821 = vmatpush2.msra.mxu0 0.0
    %1822 = vmatprep.subr.mxu0 0.0
    %1823 = vmatpush2.msra.mxu0 0.0
    %1824 = vmatprep.subr.mxu0 0.0
    %1825 = vmatpush2.msra.mxu0 0.0
    %1826 = vmatprep.subr.mxu0 0.0
    %1827 = vmatpush2.msra.mxu0 0.0
    %1828 = vmatprep.subr.mxu0 0.0
    %1829 = vmatpush2.msra.mxu0 0.0
    %1830 = vmatprep.subr.mxu0 0.0
    %1831 = vmatpush2.msra.mxu0 0.0
    %1832 = vmatprep.subr.mxu0 0.0
    %1833 = vmatpush2.msra.mxu0 0.0
    %1834 = vmatprep.subr.mxu0 0.0
    %1835 = vmatpush2.msra.mxu0 0.0
    %1836 = vmatprep.subr.mxu0 0.0
    %1837 = vmatpush2.msra.mxu0 0.0
    %1838 = vmatprep.mubr.f32.mxu0 0.0
    %1839 = vmatmul.mubr.f32.gmra.mxu0 %v1772
    %v1840 = vpop.f32.mrf.mxu0
    %v1841 = vadd.f32 %v1771, %v1840
    %v1842 = vpop.f32.mrf.mxu0
    %1843 = vdwg.mxu0
    %v1844 = vxor.u32 %v1841, 2147483648
    %v1845 = vmul.f32 %v1844, 1.442695
    %v1846 = vpow.pop %v1845
    %v1847 = vadd.f32 %v1846, 1.0
    %v1848 = vrcp.pop %v1847
    %v1849 = vmul.f32 1.0, %v1848
    %v1850 = vtanh.pop %v1841
    %v1851 = vmul.f32 %v1849, %v1759
    %1853 = vrot.lane.b32.xlu0 %v1850, 64
    %v1854 = vpop.permute.xlu0 %1853
    %v1856 = vmul.f32 %v1849, %v1854
    %1858 = vrot.lane.b32.xlu0 %v1856, 32
    %v1859 = vpop.permute.xlu0 %1858
    %v1861 = vadd.f32 %v1851, %v1859
    %v1862 = vtanh.pop %v1861
    %1864 = vrot.lane.b32.xlu0 %v1862, 64
    %v1865 = vpop.permute.xlu0 %1864
    %v1867 = vmul.f32 %v1849, %v1865
    %1869 = vrot.lane.b32.xlu0 %v1867, 32
    %v1870 = vpop.permute.xlu0 %1869
    %1872 = vst.msk [vmem:[#allocation5 + $0xc] sm:$0x3] %vm334, %v1870
    %v1873 = vld [vmem:[#allocation3 + $0xe] sm:$0x3]
    %v1874 = vsel %vm138, %v1870, 0
    %1876 = vmatprep.subr.mxu0 0.0
    %1877 = vmatpush1.msra.mxu0 0.0
    %1878 = vmatprep.subr.mxu0 0.0
    %1879 = vmatpush1.msra.mxu0 0.0
    %1880 = vmatprep.subr.mxu0 0.0
    %1881 = vmatpush1.msra.mxu0 0.0
    %1882 = vmatprep.subr.mxu0 0.0
    %1883 = vmatpush1.msra.mxu0 0.0
    %1884 = vmatprep.subr.mxu0 0.0
    %1885 = vmatpush1.msra.mxu0 0.0
    %1886 = vmatprep.subr.mxu0 0.0
    %1887 = vmatpush1.msra.mxu0 0.0
    %1888 = vmatprep.subr.mxu0 0.0
    %1889 = vmatpush1.msra.mxu0 0.0
    %1890 = vmatprep.subr.mxu0 0.0
    %1891 = vmatpush1.msra.mxu0 0.0
    %1892 = vmatprep.subr.mxu0 0.0
    %1893 = vmatpush1.msra.mxu0 0.0
    %1894 = vmatprep.subr.mxu0 0.0
    %1895 = vmatpush1.msra.mxu0 0.0
    %1896 = vmatprep.subr.mxu0 0.0
    %1897 = vmatpush1.msra.mxu0 0.0
    %1898 = vmatprep.subr.mxu0 0.0
    %1899 = vmatpush1.msra.mxu0 0.0
    %1900 = vmatprep.subr.mxu0 0.0
    %1901 = vmatpush1.msra.mxu0 %v1149
    %1902 = vmatprep.subr.mxu0 0.0
    %1903 = vmatpush1.msra.mxu0 %v1148
    %1904 = vmatprep.subr.mxu0 0.0
    %1905 = vmatpush1.msra.mxu0 %v1147
    %1906 = vmatprep.subr.mxu0 0.0
    %1907 = vmatpush1.msra.mxu0 %v1146
    %1908 = vmatprep.subr.mxu0 0.0
    %1909 = vmatpush2.msra.mxu0 0.0
    %1910 = vmatprep.subr.mxu0 0.0
    %1911 = vmatpush2.msra.mxu0 0.0
    %1912 = vmatprep.subr.mxu0 0.0
    %1913 = vmatpush2.msra.mxu0 0.0
    %1914 = vmatprep.subr.mxu0 0.0
    %1915 = vmatpush2.msra.mxu0 0.0
    %1916 = vmatprep.subr.mxu0 0.0
    %1917 = vmatpush2.msra.mxu0 0.0
    %1918 = vmatprep.subr.mxu0 0.0
    %1919 = vmatpush2.msra.mxu0 0.0
    %1920 = vmatprep.subr.mxu0 0.0
    %1921 = vmatpush2.msra.mxu0 0.0
    %1922 = vmatprep.subr.mxu0 0.0
    %1923 = vmatpush2.msra.mxu0 0.0
    %1924 = vmatprep.subr.mxu0 0.0
    %1925 = vmatpush2.msra.mxu0 0.0
    %1926 = vmatprep.subr.mxu0 0.0
    %1927 = vmatpush2.msra.mxu0 0.0
    %1928 = vmatprep.subr.mxu0 0.0
    %1929 = vmatpush2.msra.mxu0 0.0
    %1930 = vmatprep.subr.mxu0 0.0
    %1931 = vmatpush2.msra.mxu0 0.0
    %1932 = vmatprep.subr.mxu0 0.0
    %1933 = vmatpush2.msra.mxu0 0.0
    %1934 = vmatprep.subr.mxu0 0.0
    %1935 = vmatpush2.msra.mxu0 0.0
    %1936 = vmatprep.subr.mxu0 0.0
    %1937 = vmatpush2.msra.mxu0 0.0
    %1938 = vmatprep.subr.mxu0 0.0
    %1939 = vmatpush2.msra.mxu0 0.0
    %1940 = vmatprep.mubr.f32.mxu0 0.0
    %1941 = vmatmul.mubr.f32.gmra.mxu0 %v1874
    %v1942 = vpop.f32.mrf.mxu0
    %v1943 = vadd.f32 %v1873, %v1942
    %v1944 = vpop.f32.mrf.mxu0
    %1945 = vdwg.mxu0
    %v1946 = vxor.u32 %v1943, 2147483648
    %v1947 = vmul.f32 %v1946, 1.442695
    %v1948 = vpow.pop %v1947
    %v1949 = vadd.f32 %v1948, 1.0
    %v1950 = vrcp.pop %v1949
    %v1951 = vmul.f32 1.0, %v1950
    %v1952 = vtanh.pop %v1943
    %v1953 = vmul.f32 %v1951, %v1861
    %1955 = vrot.lane.b32.xlu0 %v1952, 64
    %v1956 = vpop.permute.xlu0 %1955
    %v1958 = vmul.f32 %v1951, %v1956
    %1960 = vrot.lane.b32.xlu0 %v1958, 32
    %v1961 = vpop.permute.xlu0 %1960
    %v1963 = vadd.f32 %v1953, %v1961
    %v1964 = vtanh.pop %v1963
    %1966 = vrot.lane.b32.xlu0 %v1964, 64
    %v1967 = vpop.permute.xlu0 %1966
    %v1969 = vmul.f32 %v1951, %v1967
    %1971 = vrot.lane.b32.xlu0 %v1969, 32
    %v1972 = vpop.permute.xlu0 %1971
    %1974 = vst.msk [vmem:[#allocation5 + $0xe] sm:$0x3] %vm334, %v1972
    %v1975 = vld [vmem:[#allocation5] sm:$0xff]
    %v1976 = vld [vmem:[#allocation5 + $0x8] sm:$0xff]
    %v1977 = vld [vmem:[#allocation15] sm:$0xff]
    %v1978 = vld [vmem:[#allocation15 + $0x8] sm:$0xff]
    %v1979 = vld [vmem:[#allocation15 + $0x10] sm:$0xff]
    %v1980 = vld [vmem:[#allocation15 + $0x18] sm:$0xff]
    %v1981 = vld [vmem:[%s8] sm:$0x1]
    %v1983 = vlaneseq
    %v1984 = vshrl.u32 %v1983, 7
    %v1985 = vsub.s32 0, %v1984
    %v1986 = vrot.slane %v1981, %v1985
    %v1989 = vsel %vm138, %v1975, 0
    %v1992 = vsel %vm138, %v1976, 0
    %1994 = vmatprep.subr.mxu0 0.0
    %1995 = vmatpush1.msra.mxu0 0.0
    %1996 = vmatprep.subr.mxu0 0.0
    %1997 = vmatpush1.msra.mxu0 0.0
    %1998 = vmatprep.subr.mxu0 0.0
    %1999 = vmatpush1.msra.mxu0 0.0
    %2000 = vmatprep.subr.mxu0 0.0
    %2001 = vmatpush1.msra.mxu0 0.0
    %2002 = vmatprep.subr.mxu0 0.0
    %2003 = vmatpush1.msra.mxu0 0.0
    %2004 = vmatprep.subr.mxu0 0.0
    %2005 = vmatpush1.msra.mxu0 0.0
    %2006 = vmatprep.subr.mxu0 0.0
    %2007 = vmatpush1.msra.mxu0 0.0
    %2008 = vmatprep.subr.mxu0 0.0
    %2009 = vmatpush1.msra.mxu0 0.0
    %2010 = vmatprep.subr.mxu0 0.0
    %2011 = vmatpush1.msra.mxu0 0.0
    %2012 = vmatprep.subr.mxu0 0.0
    %2013 = vmatpush1.msra.mxu0 0.0
    %2014 = vmatprep.subr.mxu0 0.0
    %2015 = vmatpush1.msra.mxu0 0.0
    %2016 = vmatprep.subr.mxu0 0.0
    %2017 = vmatpush1.msra.mxu0 0.0
    %2018 = vmatprep.subr.mxu0 0.0
    %2019 = vmatpush1.msra.mxu0 %v1980
    %2020 = vmatprep.subr.mxu0 0.0
    %2021 = vmatpush1.msra.mxu0 %v1979
    %2022 = vmatprep.subr.mxu0 0.0
    %2023 = vmatpush1.msra.mxu0 %v1978
    %2024 = vmatprep.subr.mxu0 0.0
    %2025 = vmatpush1.msra.mxu0 %v1977
    %2026 = vmatprep.subr.mxu0 0.0
    %2027 = vmatpush2.msra.mxu0 0.0
    %2028 = vmatprep.subr.mxu0 0.0
    %2029 = vmatpush2.msra.mxu0 0.0
    %2030 = vmatprep.subr.mxu0 0.0
    %2031 = vmatpush2.msra.mxu0 0.0
    %2032 = vmatprep.subr.mxu0 0.0
    %2033 = vmatpush2.msra.mxu0 0.0
    %2034 = vmatprep.subr.mxu0 0.0
    %2035 = vmatpush2.msra.mxu0 0.0
    %2036 = vmatprep.subr.mxu0 0.0
    %2037 = vmatpush2.msra.mxu0 0.0
    %2038 = vmatprep.subr.mxu0 0.0
    %2039 = vmatpush2.msra.mxu0 0.0
    %2040 = vmatprep.subr.mxu0 0.0
    %2041 = vmatpush2.msra.mxu0 0.0
    %2042 = vmatprep.subr.mxu0 0.0
    %2043 = vmatpush2.msra.mxu0 0.0
    %2044 = vmatprep.subr.mxu0 0.0
    %2045 = vmatpush2.msra.mxu0 0.0
    %2046 = vmatprep.subr.mxu0 0.0
    %2047 = vmatpush2.msra.mxu0 0.0
    %2048 = vmatprep.subr.mxu0 0.0
    %2049 = vmatpush2.msra.mxu0 0.0
    %2050 = vmatprep.subr.mxu0 0.0
    %2051 = vmatpush2.msra.mxu0 0.0
    %2052 = vmatprep.subr.mxu0 0.0
    %2053 = vmatpush2.msra.mxu0 0.0
    %2054 = vmatprep.subr.mxu0 0.0
    %2055 = vmatpush2.msra.mxu0 0.0
    %2056 = vmatprep.subr.mxu0 0.0
    %2057 = vmatpush2.msra.mxu0 0.0
    %2058 = vmatprep.mubr.f32.mxu0 0.0
    %2059 = vmatmul.mubr.f32.gmra.mxu0 %v1989
    %v2060 = vpop.f32.mrf.mxu0
    %v2061 = vadd.f32 %v1986, %v2060
    %v2062 = vpop.f32.mrf.mxu0
    %2063 = vmatprep.mubr.f32.mxu0 0.0
    %2064 = vmatmul.mubr.f32.gmra.mxu0 %v1992
    %v2065 = vpop.f32.mrf.mxu0
    %v2066 = vadd.f32 %v1986, %v2065
    %v2067 = vpop.f32.mrf.mxu0
    %2068 = vdwg.mxu0
    %vm2069 = vcmask 523264
    %2070 = vst.msk [vmem:[#allocation17] sm:$0xff] %vm2069, %v2061
    %2071 = vst.msk [vmem:[#allocation17 + $0x8] sm:$0xff] %vm2069, %v2066
    %2072 = vst.msk [vmem:[#allocation18] sm:$0x3] %vm334, %v1047
    %s2073 = scalar_lea.vmem [#allocation18], 2
    %2074 = vst.msk [vmem:[%s2073] sm:$0x3] %vm334, %v1972
    %2076 = vrot.lane.b32.xlu0 %v1038, 96
    %v2077 = vpop.permute.xlu0 %2076
    %2079 = vst.msk [vmem:[#allocation20] sm:$0x3] %vm334, %v2077
    %2081 = vrot.lane.b32.xlu0 %v1963, 96
    %v2082 = vpop.permute.xlu0 %2081
    %s2084 = scalar_lea.vmem [#allocation20], 2
    %2085 = vst.msk [vmem:[%s2084] sm:$0x3] %vm334, %v2082
    // Predicated region
    $region70: #{tpu_custom_call.1} parent=1 // pred_check
      _
    $region71: #{tpu_custom_call.1} parent=1 // pred_check_branch
      %2087 = sbr.rel (0) target = $region73
    $region72: #{tpu_custom_call.1} parent=1 // pred_region
      %s2089 = ssub.s32 256, 256
      %2090 = vsyncadd [#allocation8], %s2089
      %s2091 = sshll.u32 [#allocation17], 4
      %s2092 = int_to_ptr.vmem [resolvable:$true] %s2091
      %2097 = dma.vmem_to_hbm [thread:$0]  %s2092, 256, %s11, [#allocation8], 128, 128, 8
    $region73: #{tpu_custom_call.1} parent=1 // pred_fallthru
      _
    // Predicated region
    $region74: #{tpu_custom_call.1} parent=1 // pred_check
      _
    $region75: #{tpu_custom_call.1} parent=1 // pred_check_branch
      %2099 = sbr.rel (0) target = $region77
    $region76: #{tpu_custom_call.1} parent=1 // pred_region
      %s2101 = ssub.s32 64, 64
      %2102 = vsyncadd [#allocation19], %s2101
      %s2103 = sshll.u32 [#allocation18], 4
      %s2104 = int_to_ptr.vmem [resolvable:$true] %s2103
      %2109 = dma.vmem_to_hbm [thread:$0]  %s2104, 64, %s12, [#allocation19], 32, 32, 2
    $region77: #{tpu_custom_call.1} parent=1 // pred_fallthru
      _
    // Predicated region
    $region78: #{tpu_custom_call.1} parent=1 // pred_check
      _
    $region79: #{tpu_custom_call.1} parent=1 // pred_check_branch
      %2111 = sbr.rel (0) target = $region81
    $region80: #{tpu_custom_call.1} parent=1 // pred_region
      %s2113 = ssub.s32 64, 64
      %2114 = vsyncadd [#allocation19], %s2113
      %s2115 = sshll.u32 [#allocation20], 4
      %s2116 = int_to_ptr.vmem [resolvable:$true] %s2115
      %2121 = dma.vmem_to_hbm [thread:$0]  %s2116, 64, %s13, [#allocation19], 32, 32, 2
    $region81: #{tpu_custom_call.1} parent=1 // pred_fallthru
      _
    // Predicated region
    $region82: #{tpu_custom_call.1} parent=1 // pred_check
      _
    $region83: #{tpu_custom_call.1} parent=1 // pred_check_branch
      %2123 = sbr.rel (0) target = $region85
    $region84: #{tpu_custom_call.1} parent=1 // pred_region
      %2124 = dma.done [#allocation8], 256
    $region85: #{tpu_custom_call.1} parent=1 // pred_fallthru
      _
    // Predicated region
    $region86: #{tpu_custom_call.1} parent=1 // pred_check
      _
    $region87: #{tpu_custom_call.1} parent=1 // pred_check_branch
      %2126 = sbr.rel (0) target = $region89
    $region88: #{tpu_custom_call.1} parent=1 // pred_region
      %2127 = dma.done [#allocation19], 64
    $region89: #{tpu_custom_call.1} parent=1 // pred_fallthru
      _
    // Predicated region
    $region90: #{tpu_custom_call.1} parent=1 // pred_check
      _
    $region91: #{tpu_custom_call.1} parent=1 // pred_check_branch
      %2129 = sbr.rel (0) target = $region93
    $region92: #{tpu_custom_call.1} parent=1 // pred_region
      %2130 = dma.done [#allocation19], 64
    $region93: #{tpu_custom_call.1} parent=1 // pred_fallthru
      _
    %2131 = vsyncpa [#allocation7], 1
    %2132 = vsyncpa [#allocation10], 1
    %2133 = vsyncpa [#allocation13], 1
    %2134 = vsyncpa [#allocation16], 1
    %2135 = vsyncpa [#allocation8], 1
    %2136 = vsyncpa [#allocation19], 1

</llo_original>
